<compile_context>
chip_gen: v7x
topology: tpu7x:2x2x1
jax: 0.10.0
libtpu: 0.0.40
codegen_flags: <defaults>
</compile_context>

<pallas_src>
import functools

import jax
import jax.numpy as jnp
import numpy as np
from jax.experimental import pallas as pl
from jax.experimental.pallas import tpu as pltpu

_LANE = 128


def _cdiv(a, b):
    return -(-a // b)


def _round_down(a, m):
    return (a // m) * m


# ----------------------------------------------------------------------------
# Kernel: fused (matmul -> +bias -> ReLU)* -> matmul -> +bias on a packed
# (C*G, Tg) slab (channel x pixel-group on sublanes, pixels on lanes).
# ----------------------------------------------------------------------------
def _exposure_decoding_kernel(x_ref, hbias_ref, lbias_ref, w_hid_ref,
                              w_last_ref, o_ref, *, num_hidden, use_hbias,
                              use_lbias, compute_dtype):
    y = x_ref[...].astype(compute_dtype)                      # (CG, Tg)
    for i in range(num_hidden):
        z = jnp.dot(w_hid_ref[i], y,
                    preferred_element_type=jnp.float32)       # full-MXU matmul
        if use_hbias:
            z = z + hbias_ref[:, i:i + 1]                     # folded W_i@e (+e)
        y = jnp.maximum(z, 0.0).astype(compute_dtype)
    out = jnp.dot(w_last_ref[...], y,
                  preferred_element_type=jnp.float32)         # (OCG, Tg)
    if use_lbias:
        out = out + lbias_ref[...]
    o_ref[...] = out.astype(o_ref.dtype)                      # unmasked, lane-dense


# ----------------------------------------------------------------------------
# Wrapper: pixel-group packing (pure reshape), weight/bias folding, pallas_call
# ----------------------------------------------------------------------------
def exposure_decoding_r1(x_nchw, light_emb, exposure_prompt, w_hidden, w_last, *,
                         using_cascade=True, embedding_method='ADD',
                         compute_dtype=jnp.bfloat16,
                         group_packing=None, tile_px_cap=32768):
    """x_nchw: (B, C, H, W); light_emb: (B, C, 1, 1); exposure_prompt unused by
    the PyTorch forward.  w_hidden: (num_hidden, C, C) Conv2d weights [out, in];
    w_last: (3, C)."""
    del exposure_prompt                       # never touched by the reference
    assert embedding_method in ('ADD', 'MULTI')

    B, C, H, W = x_nchw.shape
    HW = H * W
    num_hidden = int(w_hidden.shape[0])
    out_c = int(w_last.shape[0])
    L = max(num_hidden, 1)

    # Pixel-group packing factor: fill the 256-wide MXU contraction dim on
    # v6e/v7x.  (Pass group_packing=4 on v5e to target its 128x128 MXU.)
    G = int(group_packing) if group_packing is not None else max(1, min(16, 256 // C))
    CG, OCG = C * G, out_c * G

    # MULTI-cascade folds the embedding into per-batch weights; every other
    # mode reduces to shared weights + small per-batch additive biases.
    fold_into_weights = using_cascade and embedding_method == 'MULTI'

    emb_vec = light_emb.reshape(B, C).astype(jnp.float32)
    w_hidden_f = w_hidden.astype(jnp.float32)
    w_last_f = w_last.astype(jnp.float32)

    # ---- fold embedding into weights / biases (tiny, f32) --------------------
    hb = jnp.zeros((B, L, C), jnp.float32)
    lb = jnp.zeros((B, out_c), jnp.float32)
    use_hbias = False
    use_lbias = False
    if fold_into_weights:
        # cascade MULTI:  relu(diag(e) W_i diag(e) y);  out = W_last diag(e) y
        if num_hidden > 0:
            wh = (emb_vec[:, None, :, None] * w_hidden_f[None]
                  * emb_vec[:, None, None, :])               # (B, L, C, C)
        else:
            wh = jnp.zeros((1, 1, C, C), jnp.float32)
        wl = w_last_f[None] * emb_vec[:, None, :]             # (B, out_c, C)
    else:
        wh = (w_hidden_f[None] if num_hidden > 0
              else jnp.zeros((1, 1, C, C), jnp.float32))      # (1, L, C, C)
        wl = w_last_f[None]                                   # (1, out_c, C)
        if using_cascade:                   # ADD before every layer
            if num_hidden > 0:
                hb = (jnp.einsum('loc,bc->blo', w_hidden_f, emb_vec)
                      + emb_vec[:, None, :])
                use_hbias = True
            lb = jnp.einsum('oc,bc->bo', w_last_f, emb_vec)
            use_lbias = True
        else:                               # ADD exactly once, before layer 0
            if num_hidden > 0:
                hb = hb.at[:, 0, :].set(
                    jnp.einsum('oc,bc->bo', w_hidden_f[0], emb_vec))
                use_hbias = True
            else:
                lb = jnp.einsum('oc,bc->bo', w_last_f, emb_vec)
                use_lbias = True

    # ---- block-expand weights: kron(W, I_G) matches the c*G+g row ordering ---
    eye_g = jnp.eye(G, dtype=jnp.float32)

    def _pack_mat(w):  # (..., O, Cin) -> (..., O*G, Cin*G)
        o_, c_ = w.shape[-2], w.shape[-1]
        wp = jnp.einsum('...oc,gh->...ogch', w, eye_g)
        return wp.reshape(w.shape[:-2] + (o_ * G, c_ * G))

    w_hid_k = _pack_mat(wh).astype(compute_dtype)              # (WBh, L, CG, CG)
    w_last_k = _pack_mat(wl).astype(compute_dtype)             # (WBl, OCG, CG)

    hbias = jnp.transpose(jnp.repeat(hb, G, axis=-1), (0, 2, 1))  # (B, CG, L)
    lbias = jnp.repeat(lb, G, axis=-1)[:, :, None]                # (B, OCG, 1)

    # ---- pixel tiling: big lane-dense tiles, no divisor requirement ----------
    hwg = _cdiv(HW, G * _LANE) * _LANE            # per-group pixels, 128-aligned
    tg_px_cap = max(_LANE, _round_down(max(tile_px_cap // G, _LANE), _LANE))
    tg_vmem_cap = max(_LANE, _round_down((4 * 1024 * 1024) // (CG * 4), _LANE))
    tg = min(tg_px_cap, tg_vmem_cap, hwg)
    n_t = _cdiv(hwg, tg)
    if B * n_t < 2 and hwg > _LANE:               # keep both v7x TCs busy
        tg = max(_LANE, _round_down(_cdiv(hwg, 2), _LANE))
        n_t = _cdiv(hwg, tg)
    hwg_pad = n_t * tg
    hw_pad = hwg_pad * G

    x_flat = x_nchw.reshape(B, C, HW)
    if hw_pad != HW:
        # TODO(synk): fuse this pad into the producer (or accept pre-padded /
        # bf16 input) to avoid the extra HBM pass on awkward image sizes.
        x_flat = jnp.pad(x_flat, ((0, 0), (0, 0), (0, hw_pad - HW)))
    # Pure reshape: row c*G+g <-> (channel c, pixel group g); no transpose.
    x_pack = x_flat.reshape(B, CG, hwg_pad)

    ih = ((lambda b, t: (b, 0, 0, 0)) if w_hid_k.shape[0] != 1
          else (lambda b, t: (0, 0, 0, 0)))
    il = ((lambda b, t: (b, 0, 0)) if w_last_k.shape[0] != 1
          else (lambda b, t: (0, 0, 0)))

    kernel = functools.partial(
        _exposure_decoding_kernel,
        num_hidden=num_hidden, use_hbias=use_hbias, use_lbias=use_lbias,
        compute_dtype=compute_dtype)

    out_pack = pl.pallas_call(
        kernel,
        out_shape=jax.ShapeDtypeStruct((B, OCG, hwg_pad), x_nchw.dtype),
        grid=(B, n_t),
        in_specs=[
            pl.BlockSpec((None, CG, tg), lambda b, t: (b, 0, t)),      # x (packed)
            pl.BlockSpec((None, CG, L), lambda b, t: (b, 0, 0)),       # hidden biases
            pl.BlockSpec((None, OCG, 1), lambda b, t: (b, 0, 0)),      # last bias
            pl.BlockSpec((None, L, CG, CG), ih),                       # W_hid (packed)
            pl.BlockSpec((None, OCG, CG), il),                         # W_last (packed)
        ],
        out_specs=pl.BlockSpec((None, OCG, tg), lambda b, t: (b, 0, t)),
        compiler_params=pltpu.CompilerParams(
            dimension_semantics=("parallel", "parallel"),
            vmem_limit_bytes=32 * 1024 * 1024),
    )(x_pack, hbias, lbias, w_hid_k, w_last_k)

    # Packed output rows o*G+g reshape straight back to (out_c, hw_pad).
    out = out_pack.reshape(B, out_c, hw_pad)
    if hw_pad != HW:
        out = out[:, :, :HW]
    return out.reshape(B, out_c, H, W)


# ----------------------------------------------------------------------------
# Pure-JAX reference (mirrors the PyTorch forward exactly)
# ----------------------------------------------------------------------------
def _reference(x, light_emb, w_hidden, w_last, using_cascade, embedding_method):
    def conv1x1(y, w):  # w: (O, Cin)
        return jnp.einsum('oc,bchw->bohw', w, y)

    seq = []
    for i in range(w_hidden.shape[0]):
        seq.append(('conv', w_hidden[i]))
        seq.append(('relu', None))
    seq.append(('conv', w_last))

    y = x
    if using_cascade:
        for kind, w in seq:
            y = y + light_emb if embedding_method == 'ADD' else y * light_emb
            y = conv1x1(y, w) if kind == 'conv' else jnp.maximum(y, 0.0)
    else:
        y = y + light_emb
        for kind, w in seq:
            y = conv1x1(y, w) if kind == 'conv' else jnp.maximum(y, 0.0)
    return y


if __name__ == "__main__":
    # Module config: inr_c=32, mlp_layers=3 (matches the "using-cascade" yaml).
    B, C, H, W = 2, 32, 16, 16
    mlp_layers = 3
    num_hidden = mlp_layers - 1

    key = jax.random.PRNGKey(0)
    k_x, k_emb, k_p, k_wh, k_wl = jax.random.split(key, 5)

    x = jax.random.normal(k_x, (B, C, H, W), dtype=jnp.float32)
    light_emb = jax.random.normal(k_emb, (B, C, 1, 1), dtype=jnp.float32)
    exposure_prompt = jax.random.normal(k_p, (B, C), dtype=jnp.float32)  # unused

    # Conv2d(kernel_size=1, bias=False) weights.
    w_hidden = jax.random.normal(k_wh, (num_hidden, C, C), dtype=jnp.float32) / np.sqrt(C)
    w_last = jax.random.normal(k_wl, (3, C), dtype=jnp.float32) / np.sqrt(C)

    # (using_cascade, embedding_method, compute_dtype, rtol, atol)
    configs = [
        (True,  'ADD',   jnp.float32,  2e-4, 2e-4),   # exact path vs reference
        (True,  'ADD',   jnp.bfloat16, 5e-2, 1e-1),   # fast MXU path
        (True,  'MULTI', jnp.float32,  2e-4, 2e-4),   # weight-folded path
        (True,  'MULTI', jnp.bfloat16, 5e-2, 1e-1),   # weight-folded bf16 path
        (False, 'MULTI', jnp.float32,  2e-4, 2e-4),   # non-cascade path
    ]
    for cascade, method, cdt, rtol, atol in configs:
        out = exposure_decoding_r1(
            x, light_emb, exposure_prompt, w_hidden, w_last,
            using_cascade=cascade, embedding_method=method, compute_dtype=cdt)
        out = jax.block_until_ready(out)
        ref = _reference(x, light_emb, w_hidden, w_last, cascade, method)
        np.testing.assert_allclose(np.asarray(out), np.asarray(ref),
                                   rtol=rtol, atol=atol)
        assert out.shape == (B, 3, H, W)

    print("KERNEL_OK")
</pallas_src>

<mosaic_0001>
module attributes {stable_mosaic.version = 11 : i64} {
  func.func @_exposure_decoding_kernel(%arg0: i32, %arg1: i32, %arg2: memref<1x256x128xf32, #tpu.memory_space<vmem>>, %arg3: memref<1x256x2xf32, #tpu.memory_space<vmem>>, %arg4: memref<1x24x1xf32, #tpu.memory_space<vmem>>, %arg5: memref<1x2x256x256xf32, #tpu.memory_space<vmem>>, %arg6: memref<1x24x256xf32, #tpu.memory_space<vmem>>, %arg7: memref<1x24x128xf32, #tpu.memory_space<vmem>>) attributes {dimension_semantics = [#tpu.dimension_semantics<parallel>, #tpu.dimension_semantics<parallel>], iteration_bounds = array<i64: 2, 1>, scalar_prefetch = 0 : i64, scratch_operands = 0 : i64, tpu.core_type = #tpu.core_type<tc>, window_params = [{transform_indices = @transform_0, window_bounds = array<i64: 1, 256, 128>}, {transform_indices = @transform_1, window_bounds = array<i64: 1, 256, 2>}, {transform_indices = @transform_2, window_bounds = array<i64: 1, 24, 1>}, {pipeline_mode = #tpu.pipeline_mode<synchronous>, transform_indices = @transform_3, window_bounds = array<i64: 1, 2, 256, 256>}, {pipeline_mode = #tpu.pipeline_mode<synchronous>, transform_indices = @transform_4, window_bounds = array<i64: 1, 24, 256>}, {transform_indices = @transform_5, window_bounds = array<i64: 1, 24, 128>}]} {
    %c0 = arith.constant 0 : index
    %c0_0 = arith.constant 0 : index
    %c0_1 = arith.constant 0 : index
    %0 = vector.load %arg2[%c0, %c0_0, %c0_1] : memref<1x256x128xf32, #tpu.memory_space<vmem>>, vector<1x256x128xf32>
    %1 = vector.shape_cast %0 : vector<1x256x128xf32> to vector<256x128xf32>
    %c0_2 = arith.constant 0 : index
    %c0_3 = arith.constant 0 : index
    %c0_4 = arith.constant 0 : index
    %c0_5 = arith.constant 0 : index
    %2 = vector.load %arg5[%c0_2, %c0_3, %c0_4, %c0_5] : memref<1x2x256x256xf32, #tpu.memory_space<vmem>>, vector<1x1x256x256xf32>
    %3 = vector.shape_cast %2 : vector<1x1x256x256xf32> to vector<256x256xf32>
    %cst = arith.constant dense<0.000000e+00> : vector<256x128xf32>
    %4 = tpu.matmul %3, %1, %cst {dimension_numbers = #tpu.dot_dimension_numbers<[1], [0], [0], [1], [0, 0, 1, 1], [], []>} : vector<256x256xf32>, vector<256x128xf32>, vector<256x128xf32> -> vector<256x128xf32>
    %c0_6 = arith.constant 0 : index
    %c0_7 = arith.constant 0 : index
    %c0_8 = arith.constant 0 : index
    %5 = vector.load %arg3[%c0_6, %c0_7, %c0_8] : memref<1x256x2xf32, #tpu.memory_space<vmem>>, vector<1x256x1xf32>
    %6 = vector.shape_cast %5 : vector<1x256x1xf32> to vector<256x1xf32>
    %7 = vector.broadcast %6 : vector<256x1xf32> to vector<256x128xf32>
    %8 = arith.addf %4, %7 : vector<256x128xf32>
    %cst_9 = arith.constant 0.000000e+00 : f32
    %9 = vector.broadcast %cst_9 : f32 to vector<256x128xf32>
    %10 = arith.maximumf %8, %9 : vector<256x128xf32>
    %c0_10 = arith.constant 0 : index
    %c1 = arith.constant 1 : index
    %c0_11 = arith.constant 0 : index
    %c0_12 = arith.constant 0 : index
    %11 = vector.load %arg5[%c0_10, %c1, %c0_11, %c0_12] : memref<1x2x256x256xf32, #tpu.memory_space<vmem>>, vector<1x1x256x256xf32>
    %12 = vector.shape_cast %11 : vector<1x1x256x256xf32> to vector<256x256xf32>
    %cst_13 = arith.constant dense<0.000000e+00> : vector<256x128xf32>
    %13 = tpu.matmul %12, %10, %cst_13 {dimension_numbers = #tpu.dot_dimension_numbers<[1], [0], [0], [1], [0, 0, 1, 1], [], []>} : vector<256x256xf32>, vector<256x128xf32>, vector<256x128xf32> -> vector<256x128xf32>
    %c0_14 = arith.constant 0 : index
    %c0_15 = arith.constant 0 : index
    %c1_16 = arith.constant 1 : index
    %14 = vector.load %arg3[%c0_14, %c0_15, %c1_16] : memref<1x256x2xf32, #tpu.memory_space<vmem>>, vector<1x256x1xf32>
    %15 = vector.shape_cast %14 : vector<1x256x1xf32> to vector<256x1xf32>
    %16 = vector.broadcast %15 : vector<256x1xf32> to vector<256x128xf32>
    %17 = arith.addf %13, %16 : vector<256x128xf32>
    %cst_17 = arith.constant 0.000000e+00 : f32
    %18 = vector.broadcast %cst_17 : f32 to vector<256x128xf32>
    %19 = arith.maximumf %17, %18 : vector<256x128xf32>
    %c0_18 = arith.constant 0 : index
    %c0_19 = arith.constant 0 : index
    %c0_20 = arith.constant 0 : index
    %20 = vector.load %arg6[%c0_18, %c0_19, %c0_20] : memref<1x24x256xf32, #tpu.memory_space<vmem>>, vector<1x24x256xf32>
    %21 = vector.shape_cast %20 : vector<1x24x256xf32> to vector<24x256xf32>
    %cst_21 = arith.constant dense<0.000000e+00> : vector<24x128xf32>
    %22 = tpu.matmul %21, %19, %cst_21 {dimension_numbers = #tpu.dot_dimension_numbers<[1], [0], [0], [1], [0, 0, 1, 1], [], []>} : vector<24x256xf32>, vector<256x128xf32>, vector<24x128xf32> -> vector<24x128xf32>
    %c0_22 = arith.constant 0 : index
    %c0_23 = arith.constant 0 : index
    %c0_24 = arith.constant 0 : index
    %23 = vector.load %arg4[%c0_22, %c0_23, %c0_24] : memref<1x24x1xf32, #tpu.memory_space<vmem>>, vector<1x24x1xf32>
    %24 = vector.shape_cast %23 : vector<1x24x1xf32> to vector<24x1xf32>
    %25 = vector.broadcast %24 : vector<24x1xf32> to vector<24x128xf32>
    %26 = arith.addf %22, %25 : vector<24x128xf32>
    %c0_25 = arith.constant 0 : index
    %c0_26 = arith.constant 0 : index
    %c0_27 = arith.constant 0 : index
    %27 = vector.load %arg7[%c0_25, %c0_26, %c0_27] : memref<1x24x128xf32, #tpu.memory_space<vmem>>, vector<1x24x128xf32>
    %28 = vector.shape_cast %27 : vector<1x24x128xf32> to vector<24x128xf32>
    %29 = vector.shape_cast %26 : vector<24x128xf32> to vector<1x24x128xf32>
    tpu.vector_store %arg7[%c0_25, %c0_26, %c0_27], %29 {strides = array<i32>} : memref<1x24x128xf32, #tpu.memory_space<vmem>>, vector<1x24x128xf32>,
    return
  }
  func.func @transform_0(%arg0: i32, %arg1: i32) -> (i32, i32, i32) {
    %c0_i32 = arith.constant 0 : i32
    %c0_i32_0 = arith.constant 0 : i32
    return %arg0, %c0_i32, %arg1 : i32, i32, i32
  }
  func.func @transform_1(%arg0: i32, %arg1: i32) -> (i32, i32, i32) {
    %c0_i32 = arith.constant 0 : i32
    %c0_i32_0 = arith.constant 0 : i32
    %c0_i32_1 = arith.constant 0 : i32
    return %arg0, %c0_i32, %c0_i32_0 : i32, i32, i32
  }
  func.func @transform_2(%arg0: i32, %arg1: i32) -> (i32, i32, i32) {
    %c0_i32 = arith.constant 0 : i32
    %c0_i32_0 = arith.constant 0 : i32
    %c0_i32_1 = arith.constant 0 : i32
    return %arg0, %c0_i32, %c0_i32_0 : i32, i32, i32
  }
  func.func @transform_3(%arg0: i32, %arg1: i32) -> (i32, i32, i32, i32) {
    %c0_i32 = arith.constant 0 : i32
    %c0_i32_0 = arith.constant 0 : i32
    %c0_i32_1 = arith.constant 0 : i32
    %c0_i32_2 = arith.constant 0 : i32
    %c0_i32_3 = arith.constant 0 : i32
    return %c0_i32, %c0_i32_0, %c0_i32_1, %c0_i32_2 : i32, i32, i32, i32
  }
  func.func @transform_4(%arg0: i32, %arg1: i32) -> (i32, i32, i32) {
    %c0_i32 = arith.constant 0 : i32
    %c0_i32_0 = arith.constant 0 : i32
    %c0_i32_1 = arith.constant 0 : i32
    %c0_i32_2 = arith.constant 0 : i32
    return %c0_i32, %c0_i32_0, %c0_i32_1 : i32, i32, i32
  }
  func.func @transform_5(%arg0: i32, %arg1: i32) -> (i32, i32, i32) {
    %c0_i32 = arith.constant 0 : i32
    %c0_i32_0 = arith.constant 0 : i32
    return %arg0, %c0_i32, %arg1 : i32, i32, i32
  }
}

</mosaic_0001>

<llo_original>
// kernel: tpu_custom_call.1
$region0: #{tpu_custom_call.1}
  #allocation0 [shape = 'u32[]', space=smem, size = 0x4, offset = 0x4, fixed_abs, tag = 'smem constant byte address 0x4 - core index']
  #allocation1 [shape = 'u32[144,128]{1,0:T(1,128)}', space=vmem, size = 0x12000, scoped, tag = 'internal scratch']
  %s0 = inlined_call_operand.vmem [shape: f32[2,256,128], index: 0, kind: input, shape index: {}]
  %s1 = inlined_call_operand.vmem [shape: f32[2,256,2], index: 1, kind: input, shape index: {}]
  %s2 = inlined_call_operand.vmem [shape: f32[2,24,1], index: 2, kind: input, shape index: {}]
  %s3 = inlined_call_operand.hbm [shape: f32[1,2,256,256], index: 3, kind: input, shape index: {}]
  %s4 = inlined_call_operand.vmem [shape: f32[1,24,256], index: 4, kind: input, shape index: {}]
  %s5 = inlined_call_operand.hbm [shape: f32[2,24,128], index: 5, kind: output, shape index: {}]
  %s6 = sld [smem:[#allocation0]]
  $region57: #{tpu_custom_call.1} parent=0
    _
  %s8 = ssub.s32 1, %s6
  %s9 = scalar_select 0, %s8, %s6
  $region1: #{tpu_custom_call.1} parent=0
    #allocation2 [shape = 'u8[524288]{0}', space=vmem, size = 0x80000, scoped, tag = 'input window, operand 3, single buffered']
    #allocation3 [shape = 's32[2]{0}', space=sflag, size = 0x8, scoped, tag = 'scoped memory for tpu_custom_call.1']
    #allocation4 [shape = 's32[2]{0}', space=sflag, size = 0x8, scoped, tag = 'scoped memory for tpu_custom_call.1']
    #allocation5 [shape = 'u8[24576]{0}', space=vmem, size = 0x6000, scoped, tag = 'output window, operand 0']
    %10 = vsyncpa [#allocation3], 0
    %11 = vsyncpa [#allocation4], 0
    %s12 = scalar_lea.sflag [#allocation4], 1
    %13 = vsyncpa %s12, 0
    loop: start=0, step=1, limit=4
    $region2: #{tpu_custom_call.1} parent=1 // loop_pre_header
      _
    $region3: #{tpu_custom_call.1} parent=1 // loop_header
      %s15 = sphi 0, %s19
      %p16 = scmp.ge.s32.totalorder %s15, 4
      %s22 = sphi 0, %s34
      %s23 = sphi 0, %s30
      %s24 = sphi 0, %s22
      %s25 = sphi 0, %s23
      %s26 = sphi 0, %s24
      %s27 = sphi 0, %s25
      %s39 = sphi 0, %s41
      %s42 = sphi 0, %s39
      %s43 = sphi 0, %s42
      %s59 = sphi 0, %s43
      %s65 = sphi 0, %s67
      %s68 = sphi 0, %s65
      %s69 = sphi 0, %s68
      %s85 = sphi 0, %s69
      %s91 = sphi 0, %s93
      %s94 = sphi 0, %s91
      %s95 = sphi 0, %s94
      %s111 = sphi 0, %s95
      %s115 = sphi 0, %s115
      %s117 = sphi 0, %s115
      %s118 = sphi 0, %s117
      %s132 = sphi 0, %s118
      %s136 = sphi 0, %s136
      %s138 = sphi 0, %s136
      %s139 = sphi 0, %s138
      %s153 = sphi 0, %s139
      %s161 = sphi 0, %s163
      %s164 = sphi 0, %s161
      %s165 = sphi 0, %s164
      %s181 = sphi 0, %s165
    $region4: #{tpu_custom_call.1} parent=1 // loop_header_branch
      %18 = sbr.rel (%p16) target = $region8
    $region5: #{tpu_custom_call.1} parent=1 // loop_body
      %s20 = ssub.s32 %s15, 1
      %s21 = ssub.s32 %s15, 2
      %s28 = sadd.s32 1, %s23
      %p29 = scmp.ge.s32.totalorder %s28, 1
      %s30 = scalar_select %p29, 0, %s28
      %s31 = sadd.s32 1, %s22
      %s32 = scalar_select %p29, %s31, %s22
      %p33 = scmp.ge.s32.totalorder %s32, 2
      %s34 = scalar_select %p33, 0, %s32
      %s35 = ssub.s32 %s22, %s34
      %s36 = ssub.s32 %s23, %s30
      %s37 = sor.u32 %s35, %s36
      %p38 = scmp.eq.s32.totalorder %s37, 0
      %s40 = sadd.s32 %s39, 1
      %s41 = scalar_select %p38, %s39, %s40
      %p44 = pneg %p38
      %p45 = scmp.eq.s32.totalorder %s15, 1
      %p46 = por %p44, %p45
      %p47 = scmp.ne.s32.totalorder %s39, %s42
      %p48 = scmp.eq.s32.totalorder %s15, 0
      %p49 = por %p47, %p48
      %p50 = scmp.ne.s32.totalorder %s39, %s42
      %p51 = scmp.eq.s32.totalorder %s20, 1
      %p52 = por %p50, %p51
      %p53 = scmp.ne.s32.totalorder %s42, %s43
      %p54 = scmp.eq.s32.totalorder %s20, 0
      %p55 = por %p53, %p54
      %p56 = scmp.ne.s32.totalorder %s42, %s43
      %p57 = scmp.eq.s32.totalorder %s21, 1
      %p58 = por %p56, %p57
      %p60 = scmp.ne.s32.totalorder %s43, %s59
      %p61 = scmp.eq.s32.totalorder %s21, 0
      %p62 = por %p60, %p61
      %s63 = ssub.s32 %s22, %s34
      %p64 = scmp.eq.s32.totalorder %s63, 0
      %s66 = sadd.s32 %s65, 1
      %s67 = scalar_select %p64, %s65, %s66
      %p70 = pneg %p64
      %p71 = scmp.eq.s32.totalorder %s15, 1
      %p72 = por %p70, %p71
      %p73 = scmp.ne.s32.totalorder %s65, %s68
      %p74 = scmp.eq.s32.totalorder %s15, 0
      %p75 = por %p73, %p74
      %p76 = scmp.ne.s32.totalorder %s65, %s68
      %p77 = scmp.eq.s32.totalorder %s20, 1
      %p78 = por %p76, %p77
      %p79 = scmp.ne.s32.totalorder %s68, %s69
      %p80 = scmp.eq.s32.totalorder %s20, 0
      %p81 = por %p79, %p80
      %p82 = scmp.ne.s32.totalorder %s68, %s69
      %p83 = scmp.eq.s32.totalorder %s21, 1
      %p84 = por %p82, %p83
      %p86 = scmp.ne.s32.totalorder %s69, %s85
      %p87 = scmp.eq.s32.totalorder %s21, 0
      %p88 = por %p86, %p87
      %s89 = ssub.s32 %s22, %s34
      %p90 = scmp.eq.s32.totalorder %s89, 0
      %s92 = sadd.s32 %s91, 1
      %s93 = scalar_select %p90, %s91, %s92
      %p96 = pneg %p90
      %p97 = scmp.eq.s32.totalorder %s15, 1
      %p98 = por %p96, %p97
      %p99 = scmp.ne.s32.totalorder %s91, %s94
      %p100 = scmp.eq.s32.totalorder %s15, 0
      %p101 = por %p99, %p100
      %p102 = scmp.ne.s32.totalorder %s91, %s94
      %p103 = scmp.eq.s32.totalorder %s20, 1
      %p104 = por %p102, %p103
      %p105 = scmp.ne.s32.totalorder %s94, %s95
      %p106 = scmp.eq.s32.totalorder %s20, 0
      %p107 = por %p105, %p106
      %p108 = scmp.ne.s32.totalorder %s94, %s95
      %p109 = scmp.eq.s32.totalorder %s21, 1
      %p110 = por %p108, %p109
      %p112 = scmp.ne.s32.totalorder %s95, %s111
      %p113 = scmp.eq.s32.totalorder %s21, 0
      %p114 = por %p112, %p113
      %s116 = sadd.s32 %s115, 1
      %p119 = scmp.eq.s32.totalorder %s15, 1
      %p120 = scmp.ne.s32.totalorder %s115, %s117
      %p121 = scmp.eq.s32.totalorder %s15, 0
      %p122 = por %p120, %p121
      %p123 = scmp.ne.s32.totalorder %s115, %s117
      %p124 = scmp.eq.s32.totalorder %s20, 1
      %p125 = por %p123, %p124
      %p126 = scmp.ne.s32.totalorder %s117, %s118
      %p127 = scmp.eq.s32.totalorder %s20, 0
      %p128 = por %p126, %p127
      %p129 = scmp.ne.s32.totalorder %s117, %s118
      %p130 = scmp.eq.s32.totalorder %s21, 1
      %p131 = por %p129, %p130
      %p133 = scmp.ne.s32.totalorder %s118, %s132
      %p134 = scmp.eq.s32.totalorder %s21, 0
      %p135 = por %p133, %p134
      %s137 = sadd.s32 %s136, 1
      %p140 = scmp.eq.s32.totalorder %s15, 1
      %p141 = scmp.ne.s32.totalorder %s136, %s138
      %p142 = scmp.eq.s32.totalorder %s15, 0
      %p143 = por %p141, %p142
      %p144 = scmp.ne.s32.totalorder %s136, %s138
      %p145 = scmp.eq.s32.totalorder %s20, 1
      %p146 = por %p144, %p145
      %p147 = scmp.ne.s32.totalorder %s138, %s139
      %p148 = scmp.eq.s32.totalorder %s20, 0
      %p149 = por %p147, %p148
      %p150 = scmp.ne.s32.totalorder %s138, %s139
      %p151 = scmp.eq.s32.totalorder %s21, 1
      %p152 = por %p150, %p151
      %p154 = scmp.ne.s32.totalorder %s139, %s153
      %p155 = scmp.eq.s32.totalorder %s21, 0
      %p156 = por %p154, %p155
      %s157 = ssub.s32 %s22, %s34
      %s158 = ssub.s32 %s23, %s30
      %s159 = sor.u32 %s157, %s158
      %p160 = scmp.eq.s32.totalorder %s159, 0
      %s162 = sadd.s32 %s161, 1
      %s163 = scalar_select %p160, %s161, %s162
      %p166 = pneg %p160
      %p167 = scmp.eq.s32.totalorder %s15, 1
      %p168 = por %p166, %p167
      %p169 = scmp.ne.s32.totalorder %s161, %s164
      %p170 = scmp.eq.s32.totalorder %s15, 0
      %p171 = por %p169, %p170
      %p172 = scmp.ne.s32.totalorder %s161, %s164
      %p173 = scmp.eq.s32.totalorder %s20, 1
      %p174 = por %p172, %p173
      %p175 = scmp.ne.s32.totalorder %s164, %s165
      %p176 = scmp.eq.s32.totalorder %s20, 0
      %p177 = por %p175, %p176
      %p178 = scmp.ne.s32.totalorder %s164, %s165
      %p179 = scmp.eq.s32.totalorder %s21, 1
      %p180 = por %p178, %p179
      %p182 = scmp.ne.s32.totalorder %s165, %s181
      %p183 = scmp.eq.s32.totalorder %s21, 0
      %p184 = por %p182, %p183
      %p185 = scmp.le.s32.totalorder 1, %s15
      %p186 = scmp.lt.s32.totalorder %s15, 3
      %p187 = pnand %p185, %p186
      %p188 = pneg %p187
      // Predicated region
      $region9: #{tpu_custom_call.1} parent=5 // pred_check
        _
      $region10: #{tpu_custom_call.1} parent=5 // pred_check_branch
        %190 = sbr.rel (%p187) target = $region12
      $region11: #{tpu_custom_call.1} parent=5 // pred_region
        %s191 = ssub.s32 %s15, 1
        // Predicated region
        $region13: #{tpu_custom_call.1} parent=11 // pred_check
          %p192 = pneg %p128
        $region14: #{tpu_custom_call.1} parent=11 // pred_check_branch
          %194 = sbr.rel (%p192) target = $region16
        $region15: #{tpu_custom_call.1} parent=11 // pred_region
          %s196 = ssub.s32 16384, 16384
          %197 = vsyncadd [#allocation3], %s196
          %s198 = sshll.u32 [#allocation2], 4
          %s199 = int_to_ptr.vmem [resolvable:$true] %s198
          %204 = dma.hbm_to_vmem [thread:$0]  %s3, 16384, %s199, [#allocation3], 256, 256, 16
        $region16: #{tpu_custom_call.1} parent=11 // pred_fallthru
          _
        // Predicated region
        $region17: #{tpu_custom_call.1} parent=11 // pred_check
          %p205 = pneg %p149
        $region18: #{tpu_custom_call.1} parent=11 // pred_check_branch
          %207 = sbr.rel (%p205) target = $region20
        $region19: #{tpu_custom_call.1} parent=11 // pred_region
          _
        $region20: #{tpu_custom_call.1} parent=11 // pred_fallthru
          _
      $region12: #{tpu_custom_call.1} parent=5 // pred_fallthru
        _
      %p208 = scmp.lt.s32.totalorder %s15, 2
      // Predicated region
      $region21: #{tpu_custom_call.1} parent=5 // pred_check
        %p209 = pneg %p208
      $region22: #{tpu_custom_call.1} parent=5 // pred_check_branch
        %211 = sbr.rel (%p209) target = $region24
      $region23: #{tpu_custom_call.1} parent=5 // pred_region
        // Predicated region
        $region25: #{tpu_custom_call.1} parent=23 // pred_check
          %p212 = pneg %p49
        $region26: #{tpu_custom_call.1} parent=23 // pred_check_branch
          %214 = sbr.rel (%p212) target = $region28
        $region27: #{tpu_custom_call.1} parent=23 // pred_region
          %p215 = scmp.lt.s32.totalorder %s22, 1
          %s216 = scalar_select %p215, %s22, 1
          %p217 = scmp.lt.s32.totalorder %s23, 0
          %s218 = scalar_select %p217, %s23, 0
          %s219 = smul.addr %s216, 32
          %s220 = sadd.s32 %s218, %s219
          %s221 = smul.addr %s220, 8
          %s222 = scalar_lea.vmem %s0, %s221
        $region28: #{tpu_custom_call.1} parent=23 // pred_fallthru
          _
        // Predicated region
        $region29: #{tpu_custom_call.1} parent=23 // pred_check
          %p223 = pneg %p75
        $region30: #{tpu_custom_call.1} parent=23 // pred_check_branch
          %225 = sbr.rel (%p223) target = $region32
        $region31: #{tpu_custom_call.1} parent=23 // pred_region
          %p226 = scmp.lt.s32.totalorder %s22, 1
          %s227 = scalar_select %p226, %s22, 1
          %s228 = smul.addr %s227, 32
          %s229 = smul.addr %s228, 8
          %s230 = scalar_lea.vmem %s1, %s229
        $region32: #{tpu_custom_call.1} parent=23 // pred_fallthru
          _
        // Predicated region
        $region33: #{tpu_custom_call.1} parent=23 // pred_check
          %p231 = pneg %p101
        $region34: #{tpu_custom_call.1} parent=23 // pred_check_branch
          %233 = sbr.rel (%p231) target = $region36
        $region35: #{tpu_custom_call.1} parent=23 // pred_region
          %p234 = scmp.lt.s32.totalorder %s22, 1
          %s235 = scalar_select %p234, %s22, 1
          %s236 = smul.addr %s235, 3
          %s237 = smul.addr %s236, 8
          %s238 = scalar_lea.vmem %s2, %s237
        $region36: #{tpu_custom_call.1} parent=23 // pred_fallthru
          _
      $region24: #{tpu_custom_call.1} parent=5 // pred_fallthru
        _
      %p239 = scmp.le.s32.totalorder 1, %s15
      %p240 = scmp.lt.s32.totalorder %s15, 3
      %p241 = pnand %p239, %p240
      %p242 = pneg %p241
      // Predicated region
      $region37: #{tpu_custom_call.1} parent=5 // pred_check
        _
      $region38: #{tpu_custom_call.1} parent=5 // pred_check_branch
        %244 = sbr.rel (%p241) target = $region40
      $region39: #{tpu_custom_call.1} parent=5 // pred_region
        %s245 = ssub.s32 %s15, 1
        // Predicated region
        $region41: #{tpu_custom_call.1} parent=39 // pred_check
          %p246 = pneg %p128
        $region42: #{tpu_custom_call.1} parent=39 // pred_check_branch
          %248 = sbr.rel (%p246) target = $region44
        $region43: #{tpu_custom_call.1} parent=39 // pred_region
          %249 = dma.done [#allocation3], 16384
        $region44: #{tpu_custom_call.1} parent=39 // pred_fallthru
          _
        %p250 = scmp.lt.s32.totalorder %s24, 1
        %s251 = scalar_select %p250, %s24, 1
        %p252 = scmp.lt.s32.totalorder %s25, 0
        %s253 = scalar_select %p252, %s25, 0
        %s254 = smul.addr %s251, 32
        %s255 = sadd.s32 %s253, %s254
        %s256 = smul.addr %s255, 8
        %s257 = scalar_lea.vmem %s0, %s256
        %p258 = pneg %p55
        %p259 = pneg %p52
        %p260 = scmp.lt.s32.totalorder %s24, 1
        %s261 = scalar_select %p260, %s24, 1
        %s262 = smul.addr %s261, 32
        %s263 = smul.addr %s262, 8
        %s264 = scalar_lea.vmem %s1, %s263
        %p265 = pneg %p81
        %p266 = pneg %p78
        %p267 = scmp.lt.s32.totalorder %s24, 1
        %s268 = scalar_select %p267, %s24, 1
        %s269 = smul.addr %s268, 3
        %s270 = smul.addr %s269, 8
        %s271 = scalar_lea.vmem %s2, %s270
        %p272 = pneg %p107
        %p273 = pneg %p104
        %p274 = pneg %p128
        %p275 = pneg %p125
        %p276 = pneg %p149
        %p277 = pneg %p146
        %p278 = pneg %p177
        %p279 = pneg %p174
        %s280 = sand.u32 %s164, 1
        %s281 = scalar_lea.sflag [#allocation4], %s280
        %s282 = sand.u32 %s164, 1
        %s283 = smul.addr %s282, 24
        %s284 = scalar_lea.vmem [#allocation5], %s283
        %p285 = scmp.lt.s32.totalorder %s24, 1
        %s286 = scalar_select %p285, %s24, 1
        %p287 = scmp.lt.s32.totalorder %s25, 0
        %s288 = scalar_select %p287, %s25, 0
        %s289 = smul.addr %s286, 32
        %s290 = sadd.s32 %s288, %s289
        %s291 = smul.addr %s290, 8
        %s292 = scalar_lea.vmem %s0, %s291
        %p293 = scmp.lt.s32.totalorder %s24, 1
        %s294 = scalar_select %p293, %s24, 1
        %s295 = smul.addr %s294, 32
        %s296 = smul.addr %s295, 8
        %s297 = scalar_lea.vmem %s1, %s296
        %p298 = scmp.lt.s32.totalorder %s24, 1
        %s299 = scalar_select %p298, %s24, 1
        %s300 = smul.addr %s299, 3
        %s301 = smul.addr %s300, 8
        %s302 = scalar_lea.vmem %s2, %s301
        %v303 = vld [vmem:[%s292] sm:$0xff]
        %v304 = vld [vmem:[%s292 + $0x8] sm:$0xff]
        %v305 = vld [vmem:[%s292 + $0x10] sm:$0xff]
        %v306 = vld [vmem:[%s292 + $0x18] sm:$0xff]
        %v307 = vld [vmem:[%s292 + $0x20] sm:$0xff]
        %v308 = vld [vmem:[%s292 + $0x28] sm:$0xff]
        %v309 = vld [vmem:[%s292 + $0x30] sm:$0xff]
        %v310 = vld [vmem:[%s292 + $0x38] sm:$0xff]
        %v311 = vld [vmem:[%s292 + $0x40] sm:$0xff]
        %v312 = vld [vmem:[%s292 + $0x48] sm:$0xff]
        %v313 = vld [vmem:[%s292 + $0x50] sm:$0xff]
        %v314 = vld [vmem:[%s292 + $0x58] sm:$0xff]
        %v315 = vld [vmem:[%s292 + $0x60] sm:$0xff]
        %v316 = vld [vmem:[%s292 + $0x68] sm:$0xff]
        %v317 = vld [vmem:[%s292 + $0x70] sm:$0xff]
        %v318 = vld [vmem:[%s292 + $0x78] sm:$0xff]
        %v319 = vld [vmem:[%s292 + $0x80] sm:$0xff]
        %v320 = vld [vmem:[%s292 + $0x88] sm:$0xff]
        %v321 = vld [vmem:[%s292 + $0x90] sm:$0xff]
        %v322 = vld [vmem:[%s292 + $0x98] sm:$0xff]
        %v323 = vld [vmem:[%s292 + $0xa0] sm:$0xff]
        %v324 = vld [vmem:[%s292 + $0xa8] sm:$0xff]
        %v325 = vld [vmem:[%s292 + $0xb0] sm:$0xff]
        %v326 = vld [vmem:[%s292 + $0xb8] sm:$0xff]
        %v327 = vld [vmem:[%s292 + $0xc0] sm:$0xff]
        %v328 = vld [vmem:[%s292 + $0xc8] sm:$0xff]
        %v329 = vld [vmem:[%s292 + $0xd0] sm:$0xff]
        %v330 = vld [vmem:[%s292 + $0xd8] sm:$0xff]
        %v331 = vld [vmem:[%s292 + $0xe0] sm:$0xff]
        %v332 = vld [vmem:[%s292 + $0xe8] sm:$0xff]
        %v333 = vld [vmem:[%s292 + $0xf0] sm:$0xff]
        %v334 = vld [vmem:[%s292 + $0xf8] sm:$0xff]
        %v335 = vld [vmem:[#allocation2] sm:$0xff]
        %v336 = vld [vmem:[#allocation2 + $0x8] sm:$0xff]
        %v337 = vld [vmem:[#allocation2 + $0x10] sm:$0xff]
        %v338 = vld [vmem:[#allocation2 + $0x18] sm:$0xff]
        %v339 = vld [vmem:[#allocation2 + $0x20] sm:$0xff]
        %v340 = vld [vmem:[#allocation2 + $0x28] sm:$0xff]
        %v341 = vld [vmem:[#allocation2 + $0x30] sm:$0xff]
        %v342 = vld [vmem:[#allocation2 + $0x38] sm:$0xff]
        %v343 = vld [vmem:[#allocation2 + $0x40] sm:$0xff]
        %v344 = vld [vmem:[#allocation2 + $0x48] sm:$0xff]
        %v345 = vld [vmem:[#allocation2 + $0x50] sm:$0xff]
        %v346 = vld [vmem:[#allocation2 + $0x58] sm:$0xff]
        %v347 = vld [vmem:[#allocation2 + $0x60] sm:$0xff]
        %v348 = vld [vmem:[#allocation2 + $0x68] sm:$0xff]
        %v349 = vld [vmem:[#allocation2 + $0x70] sm:$0xff]
        %v350 = vld [vmem:[#allocation2 + $0x78] sm:$0xff]
        %v351 = vld [vmem:[#allocation2 + $0x80] sm:$0xff]
        %v352 = vld [vmem:[#allocation2 + $0x88] sm:$0xff]
        %v353 = vld [vmem:[#allocation2 + $0x90] sm:$0xff]
        %v354 = vld [vmem:[#allocation2 + $0x98] sm:$0xff]
        %v355 = vld [vmem:[#allocation2 + $0xa0] sm:$0xff]
        %v356 = vld [vmem:[#allocation2 + $0xa8] sm:$0xff]
        %v357 = vld [vmem:[#allocation2 + $0xb0] sm:$0xff]
        %v358 = vld [vmem:[#allocation2 + $0xb8] sm:$0xff]
        %v359 = vld [vmem:[#allocation2 + $0xc0] sm:$0xff]
        %v360 = vld [vmem:[#allocation2 + $0xc8] sm:$0xff]
        %v361 = vld [vmem:[#allocation2 + $0xd0] sm:$0xff]
        %v362 = vld [vmem:[#allocation2 + $0xd8] sm:$0xff]
        %v363 = vld [vmem:[#allocation2 + $0xe0] sm:$0xff]
        %v364 = vld [vmem:[#allocation2 + $0xe8] sm:$0xff]
        %v365 = vld [vmem:[#allocation2 + $0xf0] sm:$0xff]
        %v366 = vld [vmem:[#allocation2 + $0xf8] sm:$0xff]
        %v367 = vld [vmem:[#allocation2 + $0x100] sm:$0xff]
        %v368 = vld [vmem:[#allocation2 + $0x108] sm:$0xff]
        %v369 = vld [vmem:[#allocation2 + $0x110] sm:$0xff]
        %v370 = vld [vmem:[#allocation2 + $0x118] sm:$0xff]
        %v371 = vld [vmem:[#allocation2 + $0x120] sm:$0xff]
        %v372 = vld [vmem:[#allocation2 + $0x128] sm:$0xff]
        %v373 = vld [vmem:[#allocation2 + $0x130] sm:$0xff]
        %v374 = vld [vmem:[#allocation2 + $0x138] sm:$0xff]
        %v375 = vld [vmem:[#allocation2 + $0x140] sm:$0xff]
        %v376 = vld [vmem:[#allocation2 + $0x148] sm:$0xff]
        %v377 = vld [vmem:[#allocation2 + $0x150] sm:$0xff]
        %v378 = vld [vmem:[#allocation2 + $0x158] sm:$0xff]
        %v379 = vld [vmem:[#allocation2 + $0x160] sm:$0xff]
        %v380 = vld [vmem:[#allocation2 + $0x168] sm:$0xff]
        %v381 = vld [vmem:[#allocation2 + $0x170] sm:$0xff]
        %v382 = vld [vmem:[#allocation2 + $0x178] sm:$0xff]
        %v383 = vld [vmem:[#allocation2 + $0x180] sm:$0xff]
        %v384 = vld [vmem:[#allocation2 + $0x188] sm:$0xff]
        %v385 = vld [vmem:[#allocation2 + $0x190] sm:$0xff]
        %v386 = vld [vmem:[#allocation2 + $0x198] sm:$0xff]
        %v387 = vld [vmem:[#allocation2 + $0x1a0] sm:$0xff]
        %v388 = vld [vmem:[#allocation2 + $0x1a8] sm:$0xff]
        %v389 = vld [vmem:[#allocation2 + $0x1b0] sm:$0xff]
        %v390 = vld [vmem:[#allocation2 + $0x1b8] sm:$0xff]
        %v391 = vld [vmem:[#allocation2 + $0x1c0] sm:$0xff]
        %v392 = vld [vmem:[#allocation2 + $0x1c8] sm:$0xff]
        %v393 = vld [vmem:[#allocation2 + $0x1d0] sm:$0xff]
        %v394 = vld [vmem:[#allocation2 + $0x1d8] sm:$0xff]
        %v395 = vld [vmem:[#allocation2 + $0x1e0] sm:$0xff]
        %v396 = vld [vmem:[#allocation2 + $0x1e8] sm:$0xff]
        %v397 = vld [vmem:[#allocation2 + $0x1f0] sm:$0xff]
        %v398 = vld [vmem:[#allocation2 + $0x1f8] sm:$0xff]
        %v399 = vld [vmem:[%s297] sm:$0xff]
        %v400 = vld [vmem:[%s297 + $0x8] sm:$0xff]
        %v401 = vld [vmem:[%s297 + $0x10] sm:$0xff]
        %v402 = vld [vmem:[%s297 + $0x18] sm:$0xff]
        %v403 = vld [vmem:[%s297 + $0x20] sm:$0xff]
        %v404 = vld [vmem:[%s297 + $0x28] sm:$0xff]
        %v405 = vld [vmem:[%s297 + $0x30] sm:$0xff]
        %v406 = vld [vmem:[%s297 + $0x38] sm:$0xff]
        %v407 = vld [vmem:[%s297 + $0x40] sm:$0xff]
        %v408 = vld [vmem:[%s297 + $0x48] sm:$0xff]
        %v409 = vld [vmem:[%s297 + $0x50] sm:$0xff]
        %v410 = vld [vmem:[%s297 + $0x58] sm:$0xff]
        %v411 = vld [vmem:[%s297 + $0x60] sm:$0xff]
        %v412 = vld [vmem:[%s297 + $0x68] sm:$0xff]
        %v413 = vld [vmem:[%s297 + $0x70] sm:$0xff]
        %v414 = vld [vmem:[%s297 + $0x78] sm:$0xff]
        %v415 = vld [vmem:[%s297 + $0x80] sm:$0xff]
        %v416 = vld [vmem:[%s297 + $0x88] sm:$0xff]
        %v417 = vld [vmem:[%s297 + $0x90] sm:$0xff]
        %v418 = vld [vmem:[%s297 + $0x98] sm:$0xff]
        %v419 = vld [vmem:[%s297 + $0xa0] sm:$0xff]
        %v420 = vld [vmem:[%s297 + $0xa8] sm:$0xff]
        %v421 = vld [vmem:[%s297 + $0xb0] sm:$0xff]
        %v422 = vld [vmem:[%s297 + $0xb8] sm:$0xff]
        %v423 = vld [vmem:[%s297 + $0xc0] sm:$0xff]
        %v424 = vld [vmem:[%s297 + $0xc8] sm:$0xff]
        %v425 = vld [vmem:[%s297 + $0xd0] sm:$0xff]
        %v426 = vld [vmem:[%s297 + $0xd8] sm:$0xff]
        %v427 = vld [vmem:[%s297 + $0xe0] sm:$0xff]
        %v428 = vld [vmem:[%s297 + $0xe8] sm:$0xff]
        %v429 = vld [vmem:[%s297 + $0xf0] sm:$0xff]
        %v430 = vld [vmem:[%s297 + $0xf8] sm:$0xff]
        %432 = vset.pattern.permute.xlu0 0
        %433 = vperm.xlu0 %432, %v399
        %v434 = vpop.permute.xlu0 %433
        %437 = vset.pattern.permute.xlu0 0
        %438 = vperm.xlu0 %437, %v400
        %v439 = vpop.permute.xlu0 %438
        %442 = vset.pattern.permute.xlu0 0
        %443 = vperm.xlu0 %442, %v401
        %v444 = vpop.permute.xlu0 %443
        %447 = vset.pattern.permute.xlu0 0
        %448 = vperm.xlu0 %447, %v402
        %v449 = vpop.permute.xlu0 %448
        %452 = vset.pattern.permute.xlu0 0
        %453 = vperm.xlu0 %452, %v403
        %v454 = vpop.permute.xlu0 %453
        %457 = vset.pattern.permute.xlu0 0
        %458 = vperm.xlu0 %457, %v404
        %v459 = vpop.permute.xlu0 %458
        %462 = vset.pattern.permute.xlu0 0
        %463 = vperm.xlu0 %462, %v405
        %v464 = vpop.permute.xlu0 %463
        %467 = vset.pattern.permute.xlu0 0
        %468 = vperm.xlu0 %467, %v406
        %v469 = vpop.permute.xlu0 %468
        %472 = vset.pattern.permute.xlu0 0
        %473 = vperm.xlu0 %472, %v407
        %v474 = vpop.permute.xlu0 %473
        %477 = vset.pattern.permute.xlu0 0
        %478 = vperm.xlu0 %477, %v408
        %v479 = vpop.permute.xlu0 %478
        %482 = vset.pattern.permute.xlu0 0
        %483 = vperm.xlu0 %482, %v409
        %v484 = vpop.permute.xlu0 %483
        %487 = vset.pattern.permute.xlu0 0
        %488 = vperm.xlu0 %487, %v410
        %v489 = vpop.permute.xlu0 %488
        %492 = vset.pattern.permute.xlu0 0
        %493 = vperm.xlu0 %492, %v411
        %v494 = vpop.permute.xlu0 %493
        %497 = vset.pattern.permute.xlu0 0
        %498 = vperm.xlu0 %497, %v412
        %v499 = vpop.permute.xlu0 %498
        %502 = vset.pattern.permute.xlu0 0
        %503 = vperm.xlu0 %502, %v413
        %v504 = vpop.permute.xlu0 %503
        %507 = vset.pattern.permute.xlu0 0
        %508 = vperm.xlu0 %507, %v414
        %v509 = vpop.permute.xlu0 %508
        %512 = vset.pattern.permute.xlu0 0
        %513 = vperm.xlu0 %512, %v415
        %v514 = vpop.permute.xlu0 %513
        %517 = vset.pattern.permute.xlu0 0
        %518 = vperm.xlu0 %517, %v416
        %v519 = vpop.permute.xlu0 %518
        %522 = vset.pattern.permute.xlu0 0
        %523 = vperm.xlu0 %522, %v417
        %v524 = vpop.permute.xlu0 %523
        %527 = vset.pattern.permute.xlu0 0
        %528 = vperm.xlu0 %527, %v418
        %v529 = vpop.permute.xlu0 %528
        %532 = vset.pattern.permute.xlu0 0
        %533 = vperm.xlu0 %532, %v419
        %v534 = vpop.permute.xlu0 %533
        %537 = vset.pattern.permute.xlu0 0
        %538 = vperm.xlu0 %537, %v420
        %v539 = vpop.permute.xlu0 %538
        %542 = vset.pattern.permute.xlu0 0
        %543 = vperm.xlu0 %542, %v421
        %v544 = vpop.permute.xlu0 %543
        %547 = vset.pattern.permute.xlu0 0
        %548 = vperm.xlu0 %547, %v422
        %v549 = vpop.permute.xlu0 %548
        %552 = vset.pattern.permute.xlu0 0
        %553 = vperm.xlu0 %552, %v423
        %v554 = vpop.permute.xlu0 %553
        %557 = vset.pattern.permute.xlu0 0
        %558 = vperm.xlu0 %557, %v424
        %v559 = vpop.permute.xlu0 %558
        %562 = vset.pattern.permute.xlu0 0
        %563 = vperm.xlu0 %562, %v425
        %v564 = vpop.permute.xlu0 %563
        %567 = vset.pattern.permute.xlu0 0
        %568 = vperm.xlu0 %567, %v426
        %v569 = vpop.permute.xlu0 %568
        %572 = vset.pattern.permute.xlu0 0
        %573 = vperm.xlu0 %572, %v427
        %v574 = vpop.permute.xlu0 %573
        %577 = vset.pattern.permute.xlu0 0
        %578 = vperm.xlu0 %577, %v428
        %v579 = vpop.permute.xlu0 %578
        %582 = vset.pattern.permute.xlu0 0
        %583 = vperm.xlu0 %582, %v429
        %v584 = vpop.permute.xlu0 %583
        %587 = vset.pattern.permute.xlu0 0
        %588 = vperm.xlu0 %587, %v430
        %v589 = vpop.permute.xlu0 %588
        %591 = vmatprep.subr.mxu0 0.0
        %592 = vmatpush1.msra.mxu0 %v303
        %593 = vmatprep.subr.mxu0 0.0
        %594 = vmatpush1.msra.mxu0 %v304
        %595 = vmatprep.subr.mxu0 0.0
        %596 = vmatpush1.msra.mxu0 %v305
        %597 = vmatprep.subr.mxu0 0.0
        %598 = vmatpush1.msra.mxu0 %v306
        %599 = vmatprep.subr.mxu0 0.0
        %600 = vmatpush1.msra.mxu0 %v307
        %601 = vmatprep.subr.mxu0 0.0
        %602 = vmatpush1.msra.mxu0 %v308
        %603 = vmatprep.subr.mxu0 0.0
        %604 = vmatpush1.msra.mxu0 %v309
        %605 = vmatprep.subr.mxu0 0.0
        %606 = vmatpush1.msra.mxu0 %v310
        %607 = vmatprep.subr.mxu0 0.0
        %608 = vmatpush1.msra.mxu0 %v311
        %609 = vmatprep.subr.mxu0 0.0
        %610 = vmatpush1.msra.mxu0 %v312
        %611 = vmatprep.subr.mxu0 0.0
        %612 = vmatpush1.msra.mxu0 %v313
        %613 = vmatprep.subr.mxu0 0.0
        %614 = vmatpush1.msra.mxu0 %v314
        %615 = vmatprep.subr.mxu0 0.0
        %616 = vmatpush1.msra.mxu0 %v315
        %617 = vmatprep.subr.mxu0 0.0
        %618 = vmatpush1.msra.mxu0 %v316
        %619 = vmatprep.subr.mxu0 0.0
        %620 = vmatpush1.msra.mxu0 %v317
        %621 = vmatprep.subr.mxu0 0.0
        %622 = vmatpush1.msra.mxu0 %v318
        %623 = vmatprep.subr.mxu0 0.0
        %624 = vmatpush1.msra.mxu0 %v319
        %625 = vmatprep.subr.mxu0 0.0
        %626 = vmatpush1.msra.mxu0 %v320
        %627 = vmatprep.subr.mxu0 0.0
        %628 = vmatpush1.msra.mxu0 %v321
        %629 = vmatprep.subr.mxu0 0.0
        %630 = vmatpush1.msra.mxu0 %v322
        %631 = vmatprep.subr.mxu0 0.0
        %632 = vmatpush1.msra.mxu0 %v323
        %633 = vmatprep.subr.mxu0 0.0
        %634 = vmatpush1.msra.mxu0 %v324
        %635 = vmatprep.subr.mxu0 0.0
        %636 = vmatpush1.msra.mxu0 %v325
        %637 = vmatprep.subr.mxu0 0.0
        %638 = vmatpush1.msra.mxu0 %v326
        %639 = vmatprep.subr.mxu0 0.0
        %640 = vmatpush1.msra.mxu0 %v327
        %641 = vmatprep.subr.mxu0 0.0
        %642 = vmatpush1.msra.mxu0 %v328
        %643 = vmatprep.subr.mxu0 0.0
        %644 = vmatpush1.msra.mxu0 %v329
        %645 = vmatprep.subr.mxu0 0.0
        %646 = vmatpush1.msra.mxu0 %v330
        %647 = vmatprep.subr.mxu0 0.0
        %648 = vmatpush1.msra.mxu0 %v331
        %649 = vmatprep.subr.mxu0 0.0
        %650 = vmatpush1.msra.mxu0 %v332
        %651 = vmatprep.subr.mxu0 0.0
        %652 = vmatpush1.msra.mxu0 %v333
        %653 = vmatprep.subr.mxu0 0.0
        %654 = vmatpush1.msra.mxu0 %v334
        %655 = vmatprep.mubr.f32.mxu0 %v336
        %656 = vmatmul.mubr.f32.gmra.mrb[0].mxu0 %v335
        %v657 = vpop.f32.mrb[0].mxu0
        %v658 = vadd.f32 %v434, %v657
        %v659 = vpop.f32.mrb[0].mxu0
        %660 = vmatprep.mubr.f32.mxu0 %v338
        %661 = vmatmul.mubr.f32.gmra.mrb[0].mxu0 %v337
        %v662 = vpop.f32.mrb[0].mxu0
        %v663 = vadd.f32 %v439, %v662
        %v664 = vpop.f32.mrb[0].mxu0
        %665 = vmatprep.mubr.f32.mxu0 %v340
        %666 = vmatmul.mubr.f32.gmra.mrb[0].mxu0 %v339
        %v667 = vpop.f32.mrb[0].mxu0
        %v668 = vadd.f32 %v444, %v667
        %v669 = vpop.f32.mrb[0].mxu0
        %670 = vmatprep.mubr.f32.mxu0 %v342
        %671 = vmatmul.mubr.f32.gmra.mrb[0].mxu0 %v341
        %v672 = vpop.f32.mrb[0].mxu0
        %v673 = vadd.f32 %v449, %v672
        %v674 = vpop.f32.mrb[0].mxu0
        %675 = vmatprep.mubr.f32.mxu0 %v344
        %676 = vmatmul.mubr.f32.gmra.mrb[0].mxu0 %v343
        %v677 = vpop.f32.mrb[0].mxu0
        %v678 = vadd.f32 %v454, %v677
        %v679 = vpop.f32.mrb[0].mxu0
        %680 = vmatprep.mubr.f32.mxu0 %v346
        %681 = vmatmul.mubr.f32.gmra.mrb[0].mxu0 %v345
        %v682 = vpop.f32.mrb[0].mxu0
        %v683 = vadd.f32 %v459, %v682
        %v684 = vpop.f32.mrb[0].mxu0
        %685 = vmatprep.mubr.f32.mxu0 %v348
        %686 = vmatmul.mubr.f32.gmra.mrb[0].mxu0 %v347
        %v687 = vpop.f32.mrb[0].mxu0
        %v688 = vadd.f32 %v464, %v687
        %v689 = vpop.f32.mrb[0].mxu0
        %690 = vmatprep.mubr.f32.mxu0 %v350
        %691 = vmatmul.mubr.f32.gmra.mrb[0].mxu0 %v349
        %v692 = vpop.f32.mrb[0].mxu0
        %v693 = vadd.f32 %v469, %v692
        %v694 = vpop.f32.mrb[0].mxu0
        %695 = vmatprep.mubr.f32.mxu0 %v352
        %696 = vmatmul.mubr.f32.gmra.mrb[0].mxu0 %v351
        %v697 = vpop.f32.mrb[0].mxu0
        %v698 = vadd.f32 %v474, %v697
        %v699 = vpop.f32.mrb[0].mxu0
        %700 = vmatprep.mubr.f32.mxu0 %v354
        %701 = vmatmul.mubr.f32.gmra.mrb[0].mxu0 %v353
        %v702 = vpop.f32.mrb[0].mxu0
        %v703 = vadd.f32 %v479, %v702
        %v704 = vpop.f32.mrb[0].mxu0
        %705 = vmatprep.mubr.f32.mxu0 %v356
        %706 = vmatmul.mubr.f32.gmra.mrb[0].mxu0 %v355
        %v707 = vpop.f32.mrb[0].mxu0
        %v708 = vadd.f32 %v484, %v707
        %v709 = vpop.f32.mrb[0].mxu0
        %710 = vmatprep.mubr.f32.mxu0 %v358
        %711 = vmatmul.mubr.f32.gmra.mrb[0].mxu0 %v357
        %v712 = vpop.f32.mrb[0].mxu0
        %v713 = vadd.f32 %v489, %v712
        %v714 = vpop.f32.mrb[0].mxu0
        %715 = vmatprep.mubr.f32.mxu0 %v360
        %716 = vmatmul.mubr.f32.gmra.mrb[0].mxu0 %v359
        %v717 = vpop.f32.mrb[0].mxu0
        %v718 = vadd.f32 %v494, %v717
        %v719 = vpop.f32.mrb[0].mxu0
        %720 = vmatprep.mubr.f32.mxu0 %v362
        %721 = vmatmul.mubr.f32.gmra.mrb[0].mxu0 %v361
        %v722 = vpop.f32.mrb[0].mxu0
        %v723 = vadd.f32 %v499, %v722
        %v724 = vpop.f32.mrb[0].mxu0
        %725 = vmatprep.mubr.f32.mxu0 %v364
        %726 = vmatmul.mubr.f32.gmra.mrb[0].mxu0 %v363
        %v727 = vpop.f32.mrb[0].mxu0
        %v728 = vadd.f32 %v504, %v727
        %v729 = vpop.f32.mrb[0].mxu0
        %730 = vmatprep.mubr.f32.mxu0 %v366
        %731 = vmatmul.mubr.f32.gmra.mrb[0].mxu0 %v365
        %v732 = vpop.f32.mrb[0].mxu0
        %v733 = vadd.f32 %v509, %v732
        %v734 = vpop.f32.mrb[0].mxu0
        %735 = vmatprep.mubr.f32.mxu0 %v368
        %736 = vmatmul.mubr.f32.gmra.mrb[0].mxu0 %v367
        %v737 = vpop.f32.mrb[0].mxu0
        %v738 = vadd.f32 %v514, %v737
        %v739 = vpop.f32.mrb[0].mxu0
        %740 = vmatprep.mubr.f32.mxu0 %v370
        %741 = vmatmul.mubr.f32.gmra.mrb[0].mxu0 %v369
        %v742 = vpop.f32.mrb[0].mxu0
        %v743 = vadd.f32 %v519, %v742
        %v744 = vpop.f32.mrb[0].mxu0
        %745 = vmatprep.mubr.f32.mxu0 %v372
        %746 = vmatmul.mubr.f32.gmra.mrb[0].mxu0 %v371
        %v747 = vpop.f32.mrb[0].mxu0
        %v748 = vadd.f32 %v524, %v747
        %v749 = vpop.f32.mrb[0].mxu0
        %750 = vmatprep.mubr.f32.mxu0 %v374
        %751 = vmatmul.mubr.f32.gmra.mrb[0].mxu0 %v373
        %v752 = vpop.f32.mrb[0].mxu0
        %v753 = vadd.f32 %v529, %v752
        %v754 = vpop.f32.mrb[0].mxu0
        %755 = vmatprep.mubr.f32.mxu0 %v376
        %756 = vmatmul.mubr.f32.gmra.mrb[0].mxu0 %v375
        %v757 = vpop.f32.mrb[0].mxu0
        %v758 = vadd.f32 %v534, %v757
        %v759 = vpop.f32.mrb[0].mxu0
        %760 = vmatprep.mubr.f32.mxu0 %v378
        %761 = vmatmul.mubr.f32.gmra.mrb[0].mxu0 %v377
        %v762 = vpop.f32.mrb[0].mxu0
        %v763 = vadd.f32 %v539, %v762
        %v764 = vpop.f32.mrb[0].mxu0
        %765 = vmatprep.mubr.f32.mxu0 %v380
        %766 = vmatmul.mubr.f32.gmra.mrb[0].mxu0 %v379
        %v767 = vpop.f32.mrb[0].mxu0
        %v768 = vadd.f32 %v544, %v767
        %v769 = vpop.f32.mrb[0].mxu0
        %770 = vmatprep.mubr.f32.mxu0 %v382
        %771 = vmatmul.mubr.f32.gmra.mrb[0].mxu0 %v381
        %v772 = vpop.f32.mrb[0].mxu0
        %v773 = vadd.f32 %v549, %v772
        %v774 = vpop.f32.mrb[0].mxu0
        %775 = vmatprep.mubr.f32.mxu0 %v384
        %776 = vmatmul.mubr.f32.gmra.mrb[0].mxu0 %v383
        %v777 = vpop.f32.mrb[0].mxu0
        %v778 = vadd.f32 %v554, %v777
        %v779 = vpop.f32.mrb[0].mxu0
        %780 = vmatprep.mubr.f32.mxu0 %v386
        %781 = vmatmul.mubr.f32.gmra.mrb[0].mxu0 %v385
        %v782 = vpop.f32.mrb[0].mxu0
        %v783 = vadd.f32 %v559, %v782
        %v784 = vpop.f32.mrb[0].mxu0
        %785 = vmatprep.mubr.f32.mxu0 %v388
        %786 = vmatmul.mubr.f32.gmra.mrb[0].mxu0 %v387
        %v787 = vpop.f32.mrb[0].mxu0
        %v788 = vadd.f32 %v564, %v787
        %v789 = vpop.f32.mrb[0].mxu0
        %790 = vmatprep.mubr.f32.mxu0 %v390
        %791 = vmatmul.mubr.f32.gmra.mrb[0].mxu0 %v389
        %v792 = vpop.f32.mrb[0].mxu0
        %v793 = vadd.f32 %v569, %v792
        %v794 = vpop.f32.mrb[0].mxu0
        %795 = vmatprep.mubr.f32.mxu0 %v392
        %796 = vmatmul.mubr.f32.gmra.mrb[0].mxu0 %v391
        %v797 = vpop.f32.mrb[0].mxu0
        %v798 = vadd.f32 %v574, %v797
        %v799 = vpop.f32.mrb[0].mxu0
        %800 = vmatprep.mubr.f32.mxu0 %v394
        %801 = vmatmul.mubr.f32.gmra.mrb[0].mxu0 %v393
        %v802 = vpop.f32.mrb[0].mxu0
        %v803 = vadd.f32 %v579, %v802
        %v804 = vpop.f32.mrb[0].mxu0
        %805 = vmatprep.mubr.f32.mxu0 %v396
        %806 = vmatmul.mubr.f32.gmra.mrb[0].mxu0 %v395
        %v807 = vpop.f32.mrb[0].mxu0
        %v808 = vadd.f32 %v584, %v807
        %v809 = vpop.f32.mrb[0].mxu0
        %810 = vmatprep.mubr.f32.mxu0 %v398
        %811 = vmatmul.mubr.f32.gmra.mrb[0].mxu0 %v397
        %v812 = vpop.f32.mrb[0].mxu0
        %v813 = vadd.f32 %v589, %v812
        %v814 = vpop.f32.mrb[0].mxu0
        %815 = vdwg.mxu0
        %v816 = vmax.f32 %v658, 0.0
        %v817 = vmax.f32 %v663, 0.0
        %v818 = vmax.f32 %v668, 0.0
        %v819 = vmax.f32 %v673, 0.0
        %v820 = vmax.f32 %v678, 0.0
        %v821 = vmax.f32 %v683, 0.0
        %v822 = vmax.f32 %v688, 0.0
        %v823 = vmax.f32 %v693, 0.0
        %v824 = vmax.f32 %v698, 0.0
        %v825 = vmax.f32 %v703, 0.0
        %v826 = vmax.f32 %v708, 0.0
        %v827 = vmax.f32 %v713, 0.0
        %v828 = vmax.f32 %v718, 0.0
        %v829 = vmax.f32 %v723, 0.0
        %v830 = vmax.f32 %v728, 0.0
        %v831 = vmax.f32 %v733, 0.0
        %v832 = vmax.f32 %v738, 0.0
        %v833 = vmax.f32 %v743, 0.0
        %v834 = vmax.f32 %v748, 0.0
        %v835 = vmax.f32 %v753, 0.0
        %v836 = vmax.f32 %v758, 0.0
        %v837 = vmax.f32 %v763, 0.0
        %v838 = vmax.f32 %v768, 0.0
        %v839 = vmax.f32 %v773, 0.0
        %v840 = vmax.f32 %v778, 0.0
        %v841 = vmax.f32 %v783, 0.0
        %v842 = vmax.f32 %v788, 0.0
        %v843 = vmax.f32 %v793, 0.0
        %v844 = vmax.f32 %v798, 0.0
        %v845 = vmax.f32 %v803, 0.0
        %v846 = vmax.f32 %v808, 0.0
        %v847 = vmax.f32 %v813, 0.0
        %s848 = scalar_lea.vmem [#allocation2], 512
        %v849 = vld [vmem:[%s848] sm:$0xff]
        %v850 = vld [vmem:[%s848 + $0x8] sm:$0xff]
        %v851 = vld [vmem:[%s848 + $0x10] sm:$0xff]
        %v852 = vld [vmem:[%s848 + $0x18] sm:$0xff]
        %v853 = vld [vmem:[%s848 + $0x20] sm:$0xff]
        %v854 = vld [vmem:[%s848 + $0x28] sm:$0xff]
        %v855 = vld [vmem:[%s848 + $0x30] sm:$0xff]
        %v856 = vld [vmem:[%s848 + $0x38] sm:$0xff]
        %v857 = vld [vmem:[%s848 + $0x40] sm:$0xff]
        %v858 = vld [vmem:[%s848 + $0x48] sm:$0xff]
        %v859 = vld [vmem:[%s848 + $0x50] sm:$0xff]
        %v860 = vld [vmem:[%s848 + $0x58] sm:$0xff]
        %v861 = vld [vmem:[%s848 + $0x60] sm:$0xff]
        %v862 = vld [vmem:[%s848 + $0x68] sm:$0xff]
        %v863 = vld [vmem:[%s848 + $0x70] sm:$0xff]
        %v864 = vld [vmem:[%s848 + $0x78] sm:$0xff]
        %v865 = vld [vmem:[%s848 + $0x80] sm:$0xff]
        %v866 = vld [vmem:[%s848 + $0x88] sm:$0xff]
        %v867 = vld [vmem:[%s848 + $0x90] sm:$0xff]
        %v868 = vld [vmem:[%s848 + $0x98] sm:$0xff]
        %v869 = vld [vmem:[%s848 + $0xa0] sm:$0xff]
        %v870 = vld [vmem:[%s848 + $0xa8] sm:$0xff]
        %v871 = vld [vmem:[%s848 + $0xb0] sm:$0xff]
        %v872 = vld [vmem:[%s848 + $0xb8] sm:$0xff]
        %v873 = vld [vmem:[%s848 + $0xc0] sm:$0xff]
        %v874 = vld [vmem:[%s848 + $0xc8] sm:$0xff]
        %v875 = vld [vmem:[%s848 + $0xd0] sm:$0xff]
        %v876 = vld [vmem:[%s848 + $0xd8] sm:$0xff]
        %v877 = vld [vmem:[%s848 + $0xe0] sm:$0xff]
        %v878 = vld [vmem:[%s848 + $0xe8] sm:$0xff]
        %v879 = vld [vmem:[%s848 + $0xf0] sm:$0xff]
        %v880 = vld [vmem:[%s848 + $0xf8] sm:$0xff]
        %v881 = vld [vmem:[%s848 + $0x100] sm:$0xff]
        %v882 = vld [vmem:[%s848 + $0x108] sm:$0xff]
        %v883 = vld [vmem:[%s848 + $0x110] sm:$0xff]
        %v884 = vld [vmem:[%s848 + $0x118] sm:$0xff]
        %v885 = vld [vmem:[%s848 + $0x120] sm:$0xff]
        %v886 = vld [vmem:[%s848 + $0x128] sm:$0xff]
        %v887 = vld [vmem:[%s848 + $0x130] sm:$0xff]
        %v888 = vld [vmem:[%s848 + $0x138] sm:$0xff]
        %v889 = vld [vmem:[%s848 + $0x140] sm:$0xff]
        %v890 = vld [vmem:[%s848 + $0x148] sm:$0xff]
        %v891 = vld [vmem:[%s848 + $0x150] sm:$0xff]
        %v892 = vld [vmem:[%s848 + $0x158] sm:$0xff]
        %v893 = vld [vmem:[%s848 + $0x160] sm:$0xff]
        %v894 = vld [vmem:[%s848 + $0x168] sm:$0xff]
        %v895 = vld [vmem:[%s848 + $0x170] sm:$0xff]
        %v896 = vld [vmem:[%s848 + $0x178] sm:$0xff]
        %v897 = vld [vmem:[%s848 + $0x180] sm:$0xff]
        %v898 = vld [vmem:[%s848 + $0x188] sm:$0xff]
        %v899 = vld [vmem:[%s848 + $0x190] sm:$0xff]
        %v900 = vld [vmem:[%s848 + $0x198] sm:$0xff]
        %v901 = vld [vmem:[%s848 + $0x1a0] sm:$0xff]
        %v902 = vld [vmem:[%s848 + $0x1a8] sm:$0xff]
        %v903 = vld [vmem:[%s848 + $0x1b0] sm:$0xff]
        %v904 = vld [vmem:[%s848 + $0x1b8] sm:$0xff]
        %v905 = vld [vmem:[%s848 + $0x1c0] sm:$0xff]
        %v906 = vld [vmem:[%s848 + $0x1c8] sm:$0xff]
        %v907 = vld [vmem:[%s848 + $0x1d0] sm:$0xff]
        %v908 = vld [vmem:[%s848 + $0x1d8] sm:$0xff]
        %v909 = vld [vmem:[%s848 + $0x1e0] sm:$0xff]
        %v910 = vld [vmem:[%s848 + $0x1e8] sm:$0xff]
        %v911 = vld [vmem:[%s848 + $0x1f0] sm:$0xff]
        %v912 = vld [vmem:[%s848 + $0x1f8] sm:$0xff]
        %913 = vset.pattern.permute.xlu0 1
        %914 = vperm.xlu0 %913, %v399
        %v915 = vpop.permute.xlu0 %914
        %917 = vset.pattern.permute.xlu0 1
        %918 = vperm.xlu0 %917, %v400
        %v919 = vpop.permute.xlu0 %918
        %921 = vset.pattern.permute.xlu0 1
        %922 = vperm.xlu0 %921, %v401
        %v923 = vpop.permute.xlu0 %922
        %925 = vset.pattern.permute.xlu0 1
        %926 = vperm.xlu0 %925, %v402
        %v927 = vpop.permute.xlu0 %926
        %929 = vset.pattern.permute.xlu0 1
        %930 = vperm.xlu0 %929, %v403
        %v931 = vpop.permute.xlu0 %930
        %933 = vset.pattern.permute.xlu0 1
        %934 = vperm.xlu0 %933, %v404
        %v935 = vpop.permute.xlu0 %934
        %937 = vset.pattern.permute.xlu0 1
        %938 = vperm.xlu0 %937, %v405
        %v939 = vpop.permute.xlu0 %938
        %941 = vset.pattern.permute.xlu0 1
        %942 = vperm.xlu0 %941, %v406
        %v943 = vpop.permute.xlu0 %942
        %945 = vset.pattern.permute.xlu0 1
        %946 = vperm.xlu0 %945, %v407
        %v947 = vpop.permute.xlu0 %946
        %949 = vset.pattern.permute.xlu0 1
        %950 = vperm.xlu0 %949, %v408
        %v951 = vpop.permute.xlu0 %950
        %953 = vset.pattern.permute.xlu0 1
        %954 = vperm.xlu0 %953, %v409
        %v955 = vpop.permute.xlu0 %954
        %957 = vset.pattern.permute.xlu0 1
        %958 = vperm.xlu0 %957, %v410
        %v959 = vpop.permute.xlu0 %958
        %961 = vset.pattern.permute.xlu0 1
        %962 = vperm.xlu0 %961, %v411
        %v963 = vpop.permute.xlu0 %962
        %965 = vset.pattern.permute.xlu0 1
        %966 = vperm.xlu0 %965, %v412
        %v967 = vpop.permute.xlu0 %966
        %969 = vset.pattern.permute.xlu0 1
        %970 = vperm.xlu0 %969, %v413
        %v971 = vpop.permute.xlu0 %970
        %973 = vset.pattern.permute.xlu0 1
        %974 = vperm.xlu0 %973, %v414
        %v975 = vpop.permute.xlu0 %974
        %977 = vset.pattern.permute.xlu0 1
        %978 = vperm.xlu0 %977, %v415
        %v979 = vpop.permute.xlu0 %978
        %981 = vset.pattern.permute.xlu0 1
        %982 = vperm.xlu0 %981, %v416
        %v983 = vpop.permute.xlu0 %982
        %985 = vset.pattern.permute.xlu0 1
        %986 = vperm.xlu0 %985, %v417
        %v987 = vpop.permute.xlu0 %986
        %989 = vset.pattern.permute.xlu0 1
        %990 = vperm.xlu0 %989, %v418
        %v991 = vpop.permute.xlu0 %990
        %993 = vset.pattern.permute.xlu0 1
        %994 = vperm.xlu0 %993, %v419
        %v995 = vpop.permute.xlu0 %994
        %997 = vset.pattern.permute.xlu0 1
        %998 = vperm.xlu0 %997, %v420
        %v999 = vpop.permute.xlu0 %998
        %1001 = vset.pattern.permute.xlu0 1
        %1002 = vperm.xlu0 %1001, %v421
        %v1003 = vpop.permute.xlu0 %1002
        %1005 = vset.pattern.permute.xlu0 1
        %1006 = vperm.xlu0 %1005, %v422
        %v1007 = vpop.permute.xlu0 %1006
        %1009 = vset.pattern.permute.xlu0 1
        %1010 = vperm.xlu0 %1009, %v423
        %v1011 = vpop.permute.xlu0 %1010
        %1013 = vset.pattern.permute.xlu0 1
        %1014 = vperm.xlu0 %1013, %v424
        %v1015 = vpop.permute.xlu0 %1014
        %1017 = vset.pattern.permute.xlu0 1
        %1018 = vperm.xlu0 %1017, %v425
        %v1019 = vpop.permute.xlu0 %1018
        %1021 = vset.pattern.permute.xlu0 1
        %1022 = vperm.xlu0 %1021, %v426
        %v1023 = vpop.permute.xlu0 %1022
        %1025 = vset.pattern.permute.xlu0 1
        %1026 = vperm.xlu0 %1025, %v427
        %v1027 = vpop.permute.xlu0 %1026
        %1029 = vset.pattern.permute.xlu0 1
        %1030 = vperm.xlu0 %1029, %v428
        %v1031 = vpop.permute.xlu0 %1030
        %1033 = vset.pattern.permute.xlu0 1
        %1034 = vperm.xlu0 %1033, %v429
        %v1035 = vpop.permute.xlu0 %1034
        %1037 = vset.pattern.permute.xlu0 1
        %1038 = vperm.xlu0 %1037, %v430
        %v1039 = vpop.permute.xlu0 %1038
        %1041 = vmatprep.subr.mxu0 0.0
        %1042 = vmatpush1.msra.mxu0 %v816
        %1043 = vmatprep.subr.mxu0 0.0
        %1044 = vmatpush1.msra.mxu0 %v817
        %1045 = vmatprep.subr.mxu0 0.0
        %1046 = vmatpush1.msra.mxu0 %v818
        %1047 = vmatprep.subr.mxu0 0.0
        %1048 = vmatpush1.msra.mxu0 %v819
        %1049 = vmatprep.subr.mxu0 0.0
        %1050 = vmatpush1.msra.mxu0 %v820
        %1051 = vmatprep.subr.mxu0 0.0
        %1052 = vmatpush1.msra.mxu0 %v821
        %1053 = vmatprep.subr.mxu0 0.0
        %1054 = vmatpush1.msra.mxu0 %v822
        %1055 = vmatprep.subr.mxu0 0.0
        %1056 = vmatpush1.msra.mxu0 %v823
        %1057 = vmatprep.subr.mxu0 0.0
        %1058 = vmatpush1.msra.mxu0 %v824
        %1059 = vmatprep.subr.mxu0 0.0
        %1060 = vmatpush1.msra.mxu0 %v825
        %1061 = vmatprep.subr.mxu0 0.0
        %1062 = vmatpush1.msra.mxu0 %v826
        %1063 = vmatprep.subr.mxu0 0.0
        %1064 = vmatpush1.msra.mxu0 %v827
        %1065 = vmatprep.subr.mxu0 0.0
        %1066 = vmatpush1.msra.mxu0 %v828
        %1067 = vmatprep.subr.mxu0 0.0
        %1068 = vmatpush1.msra.mxu0 %v829
        %1069 = vmatprep.subr.mxu0 0.0
        %1070 = vmatpush1.msra.mxu0 %v830
        %1071 = vmatprep.subr.mxu0 0.0
        %1072 = vmatpush1.msra.mxu0 %v831
        %1073 = vmatprep.subr.mxu0 0.0
        %1074 = vmatpush1.msra.mxu0 %v832
        %1075 = vmatprep.subr.mxu0 0.0
        %1076 = vmatpush1.msra.mxu0 %v833
        %1077 = vmatprep.subr.mxu0 0.0
        %1078 = vmatpush1.msra.mxu0 %v834
        %1079 = vmatprep.subr.mxu0 0.0
        %1080 = vmatpush1.msra.mxu0 %v835
        %1081 = vmatprep.subr.mxu0 0.0
        %1082 = vmatpush1.msra.mxu0 %v836
        %1083 = vmatprep.subr.mxu0 0.0
        %1084 = vmatpush1.msra.mxu0 %v837
        %1085 = vmatprep.subr.mxu0 0.0
        %1086 = vmatpush1.msra.mxu0 %v838
        %1087 = vmatprep.subr.mxu0 0.0
        %1088 = vmatpush1.msra.mxu0 %v839
        %1089 = vmatprep.subr.mxu0 0.0
        %1090 = vmatpush1.msra.mxu0 %v840
        %1091 = vmatprep.subr.mxu0 0.0
        %1092 = vmatpush1.msra.mxu0 %v841
        %1093 = vmatprep.subr.mxu0 0.0
        %1094 = vmatpush1.msra.mxu0 %v842
        %1095 = vmatprep.subr.mxu0 0.0
        %1096 = vmatpush1.msra.mxu0 %v843
        %1097 = vmatprep.subr.mxu0 0.0
        %1098 = vmatpush1.msra.mxu0 %v844
        %1099 = vmatprep.subr.mxu0 0.0
        %1100 = vmatpush1.msra.mxu0 %v845
        %1101 = vmatprep.subr.mxu0 0.0
        %1102 = vmatpush1.msra.mxu0 %v846
        %1103 = vmatprep.subr.mxu0 0.0
        %1104 = vmatpush1.msra.mxu0 %v847
        %1105 = vmatprep.mubr.f32.mxu0 %v850
        %1106 = vmatmul.mubr.f32.gmra.mrb[0].mxu0 %v849
        %v1107 = vpop.f32.mrb[0].mxu0
        %v1108 = vadd.f32 %v915, %v1107
        %v1109 = vpop.f32.mrb[0].mxu0
        %1110 = vmatprep.mubr.f32.mxu0 %v852
        %1111 = vmatmul.mubr.f32.gmra.mrb[0].mxu0 %v851
        %v1112 = vpop.f32.mrb[0].mxu0
        %v1113 = vadd.f32 %v919, %v1112
        %v1114 = vpop.f32.mrb[0].mxu0
        %1115 = vmatprep.mubr.f32.mxu0 %v854
        %1116 = vmatmul.mubr.f32.gmra.mrb[0].mxu0 %v853
        %v1117 = vpop.f32.mrb[0].mxu0
        %v1118 = vadd.f32 %v923, %v1117
        %v1119 = vpop.f32.mrb[0].mxu0
        %1120 = vmatprep.mubr.f32.mxu0 %v856
        %1121 = vmatmul.mubr.f32.gmra.mrb[0].mxu0 %v855
        %v1122 = vpop.f32.mrb[0].mxu0
        %v1123 = vadd.f32 %v927, %v1122
        %v1124 = vpop.f32.mrb[0].mxu0
        %1125 = vmatprep.mubr.f32.mxu0 %v858
        %1126 = vmatmul.mubr.f32.gmra.mrb[0].mxu0 %v857
        %v1127 = vpop.f32.mrb[0].mxu0
        %v1128 = vadd.f32 %v931, %v1127
        %v1129 = vpop.f32.mrb[0].mxu0
        %1130 = vmatprep.mubr.f32.mxu0 %v860
        %1131 = vmatmul.mubr.f32.gmra.mrb[0].mxu0 %v859
        %v1132 = vpop.f32.mrb[0].mxu0
        %v1133 = vadd.f32 %v935, %v1132
        %v1134 = vpop.f32.mrb[0].mxu0
        %1135 = vmatprep.mubr.f32.mxu0 %v862
        %1136 = vmatmul.mubr.f32.gmra.mrb[0].mxu0 %v861
        %v1137 = vpop.f32.mrb[0].mxu0
        %v1138 = vadd.f32 %v939, %v1137
        %v1139 = vpop.f32.mrb[0].mxu0
        %1140 = vmatprep.mubr.f32.mxu0 %v864
        %1141 = vmatmul.mubr.f32.gmra.mrb[0].mxu0 %v863
        %v1142 = vpop.f32.mrb[0].mxu0
        %v1143 = vadd.f32 %v943, %v1142
        %v1144 = vpop.f32.mrb[0].mxu0
        %1145 = vmatprep.mubr.f32.mxu0 %v866
        %1146 = vmatmul.mubr.f32.gmra.mrb[0].mxu0 %v865
        %v1147 = vpop.f32.mrb[0].mxu0
        %v1148 = vadd.f32 %v947, %v1147
        %v1149 = vpop.f32.mrb[0].mxu0
        %1150 = vmatprep.mubr.f32.mxu0 %v868
        %1151 = vmatmul.mubr.f32.gmra.mrb[0].mxu0 %v867
        %v1152 = vpop.f32.mrb[0].mxu0
        %v1153 = vadd.f32 %v951, %v1152
        %v1154 = vpop.f32.mrb[0].mxu0
        %1155 = vmatprep.mubr.f32.mxu0 %v870
        %1156 = vmatmul.mubr.f32.gmra.mrb[0].mxu0 %v869
        %v1157 = vpop.f32.mrb[0].mxu0
        %v1158 = vadd.f32 %v955, %v1157
        %v1159 = vpop.f32.mrb[0].mxu0
        %1160 = vmatprep.mubr.f32.mxu0 %v872
        %1161 = vmatmul.mubr.f32.gmra.mrb[0].mxu0 %v871
        %v1162 = vpop.f32.mrb[0].mxu0
        %v1163 = vadd.f32 %v959, %v1162
        %v1164 = vpop.f32.mrb[0].mxu0
        %1165 = vmatprep.mubr.f32.mxu0 %v874
        %1166 = vmatmul.mubr.f32.gmra.mrb[0].mxu0 %v873
        %v1167 = vpop.f32.mrb[0].mxu0
        %v1168 = vadd.f32 %v963, %v1167
        %v1169 = vpop.f32.mrb[0].mxu0
        %1170 = vmatprep.mubr.f32.mxu0 %v876
        %1171 = vmatmul.mubr.f32.gmra.mrb[0].mxu0 %v875
        %v1172 = vpop.f32.mrb[0].mxu0
        %v1173 = vadd.f32 %v967, %v1172
        %v1174 = vpop.f32.mrb[0].mxu0
        %1175 = vmatprep.mubr.f32.mxu0 %v878
        %1176 = vmatmul.mubr.f32.gmra.mrb[0].mxu0 %v877
        %v1177 = vpop.f32.mrb[0].mxu0
        %v1178 = vadd.f32 %v971, %v1177
        %v1179 = vpop.f32.mrb[0].mxu0
        %1180 = vmatprep.mubr.f32.mxu0 %v880
        %1181 = vmatmul.mubr.f32.gmra.mrb[0].mxu0 %v879
        %v1182 = vpop.f32.mrb[0].mxu0
        %v1183 = vadd.f32 %v975, %v1182
        %v1184 = vpop.f32.mrb[0].mxu0
        %1185 = vmatprep.mubr.f32.mxu0 %v882
        %1186 = vmatmul.mubr.f32.gmra.mrb[0].mxu0 %v881
        %v1187 = vpop.f32.mrb[0].mxu0
        %v1188 = vadd.f32 %v979, %v1187
        %v1189 = vpop.f32.mrb[0].mxu0
        %1190 = vmatprep.mubr.f32.mxu0 %v884
        %1191 = vmatmul.mubr.f32.gmra.mrb[0].mxu0 %v883
        %v1192 = vpop.f32.mrb[0].mxu0
        %v1193 = vadd.f32 %v983, %v1192
        %v1194 = vpop.f32.mrb[0].mxu0
        %1195 = vmatprep.mubr.f32.mxu0 %v886
        %1196 = vmatmul.mubr.f32.gmra.mrb[0].mxu0 %v885
        %v1197 = vpop.f32.mrb[0].mxu0
        %v1198 = vadd.f32 %v987, %v1197
        %v1199 = vpop.f32.mrb[0].mxu0
        %1200 = vmatprep.mubr.f32.mxu0 %v888
        %1201 = vmatmul.mubr.f32.gmra.mrb[0].mxu0 %v887
        %v1202 = vpop.f32.mrb[0].mxu0
        %v1203 = vadd.f32 %v991, %v1202
        %v1204 = vpop.f32.mrb[0].mxu0
        %1205 = vmatprep.mubr.f32.mxu0 %v890
        %1206 = vmatmul.mubr.f32.gmra.mrb[0].mxu0 %v889
        %v1207 = vpop.f32.mrb[0].mxu0
        %v1208 = vadd.f32 %v995, %v1207
        %v1209 = vpop.f32.mrb[0].mxu0
        %1210 = vmatprep.mubr.f32.mxu0 %v892
        %1211 = vmatmul.mubr.f32.gmra.mrb[0].mxu0 %v891
        %v1212 = vpop.f32.mrb[0].mxu0
        %v1213 = vadd.f32 %v999, %v1212
        %v1214 = vpop.f32.mrb[0].mxu0
        %1215 = vmatprep.mubr.f32.mxu0 %v894
        %1216 = vmatmul.mubr.f32.gmra.mrb[0].mxu0 %v893
        %v1217 = vpop.f32.mrb[0].mxu0
        %v1218 = vadd.f32 %v1003, %v1217
        %v1219 = vpop.f32.mrb[0].mxu0
        %1220 = vmatprep.mubr.f32.mxu0 %v896
        %1221 = vmatmul.mubr.f32.gmra.mrb[0].mxu0 %v895
        %v1222 = vpop.f32.mrb[0].mxu0
        %v1223 = vadd.f32 %v1007, %v1222
        %v1224 = vpop.f32.mrb[0].mxu0
        %1225 = vmatprep.mubr.f32.mxu0 %v898
        %1226 = vmatmul.mubr.f32.gmra.mrb[0].mxu0 %v897
        %v1227 = vpop.f32.mrb[0].mxu0
        %v1228 = vadd.f32 %v1011, %v1227
        %v1229 = vpop.f32.mrb[0].mxu0
        %1230 = vmatprep.mubr.f32.mxu0 %v900
        %1231 = vmatmul.mubr.f32.gmra.mrb[0].mxu0 %v899
        %v1232 = vpop.f32.mrb[0].mxu0
        %v1233 = vadd.f32 %v1015, %v1232
        %v1234 = vpop.f32.mrb[0].mxu0
        %1235 = vmatprep.mubr.f32.mxu0 %v902
        %1236 = vmatmul.mubr.f32.gmra.mrb[0].mxu0 %v901
        %v1237 = vpop.f32.mrb[0].mxu0
        %v1238 = vadd.f32 %v1019, %v1237
        %v1239 = vpop.f32.mrb[0].mxu0
        %1240 = vmatprep.mubr.f32.mxu0 %v904
        %1241 = vmatmul.mubr.f32.gmra.mrb[0].mxu0 %v903
        %v1242 = vpop.f32.mrb[0].mxu0
        %v1243 = vadd.f32 %v1023, %v1242
        %v1244 = vpop.f32.mrb[0].mxu0
        %1245 = vmatprep.mubr.f32.mxu0 %v906
        %1246 = vmatmul.mubr.f32.gmra.mrb[0].mxu0 %v905
        %v1247 = vpop.f32.mrb[0].mxu0
        %v1248 = vadd.f32 %v1027, %v1247
        %v1249 = vpop.f32.mrb[0].mxu0
        %1250 = vmatprep.mubr.f32.mxu0 %v908
        %1251 = vmatmul.mubr.f32.gmra.mrb[0].mxu0 %v907
        %v1252 = vpop.f32.mrb[0].mxu0
        %v1253 = vadd.f32 %v1031, %v1252
        %v1254 = vpop.f32.mrb[0].mxu0
        %1255 = vmatprep.mubr.f32.mxu0 %v910
        %1256 = vmatmul.mubr.f32.gmra.mrb[0].mxu0 %v909
        %v1257 = vpop.f32.mrb[0].mxu0
        %v1258 = vadd.f32 %v1035, %v1257
        %v1259 = vpop.f32.mrb[0].mxu0
        %1260 = vmatprep.mubr.f32.mxu0 %v912
        %1261 = vmatmul.mubr.f32.gmra.mrb[0].mxu0 %v911
        %v1262 = vpop.f32.mrb[0].mxu0
        %v1263 = vadd.f32 %v1039, %v1262
        %v1264 = vpop.f32.mrb[0].mxu0
        %1265 = vdwg.mxu0
        %v1266 = vmax.f32 %v1108, 0.0
        %v1267 = vmax.f32 %v1113, 0.0
        %v1268 = vmax.f32 %v1118, 0.0
        %v1269 = vmax.f32 %v1123, 0.0
        %v1270 = vmax.f32 %v1128, 0.0
        %v1271 = vmax.f32 %v1133, 0.0
        %v1272 = vmax.f32 %v1138, 0.0
        %v1273 = vmax.f32 %v1143, 0.0
        %v1274 = vmax.f32 %v1148, 0.0
        %v1275 = vmax.f32 %v1153, 0.0
        %v1276 = vmax.f32 %v1158, 0.0
        %v1277 = vmax.f32 %v1163, 0.0
        %v1278 = vmax.f32 %v1168, 0.0
        %v1279 = vmax.f32 %v1173, 0.0
        %v1280 = vmax.f32 %v1178, 0.0
        %v1281 = vmax.f32 %v1183, 0.0
        %v1282 = vmax.f32 %v1188, 0.0
        %v1283 = vmax.f32 %v1193, 0.0
        %v1284 = vmax.f32 %v1198, 0.0
        %v1285 = vmax.f32 %v1203, 0.0
        %v1286 = vmax.f32 %v1208, 0.0
        %v1287 = vmax.f32 %v1213, 0.0
        %v1288 = vmax.f32 %v1218, 0.0
        %v1289 = vmax.f32 %v1223, 0.0
        %v1290 = vmax.f32 %v1228, 0.0
        %v1291 = vmax.f32 %v1233, 0.0
        %v1292 = vmax.f32 %v1238, 0.0
        %v1293 = vmax.f32 %v1243, 0.0
        %v1294 = vmax.f32 %v1248, 0.0
        %v1295 = vmax.f32 %v1253, 0.0
        %v1296 = vmax.f32 %v1258, 0.0
        %v1297 = vmax.f32 %v1263, 0.0
        %v1298 = vld [vmem:[%s4] sm:$0xff]
        %v1299 = vld [vmem:[%s4 + $0x8] sm:$0xff]
        %v1300 = vld [vmem:[%s4 + $0x10] sm:$0xff]
        %v1301 = vld [vmem:[%s4 + $0x18] sm:$0xff]
        %v1302 = vld [vmem:[%s4 + $0x20] sm:$0xff]
        %v1303 = vld [vmem:[%s4 + $0x28] sm:$0xff]
        %v1304 = vld [vmem:[%s302] sm:$0xff]
        %v1305 = vld [vmem:[%s302 + $0x8] sm:$0xff]
        %v1306 = vld [vmem:[%s302 + $0x10] sm:$0xff]
        %1308 = vset.pattern.permute.xlu0 0
        %1309 = vperm.xlu0 %1308, %v1304
        %v1310 = vpop.permute.xlu0 %1309
        %1313 = vset.pattern.permute.xlu0 0
        %1314 = vperm.xlu0 %1313, %v1305
        %v1315 = vpop.permute.xlu0 %1314
        %1318 = vset.pattern.permute.xlu0 0
        %1319 = vperm.xlu0 %1318, %v1306
        %v1320 = vpop.permute.xlu0 %1319
        %1322 = vmatprep.subr.mxu0 0.0
        %1323 = vmatpush1.msra.mxu0 %v1266
        %1324 = vmatprep.subr.mxu0 0.0
        %1325 = vmatpush1.msra.mxu0 %v1267
        %1326 = vmatprep.subr.mxu0 0.0
        %1327 = vmatpush1.msra.mxu0 %v1268
        %1328 = vmatprep.subr.mxu0 0.0
        %1329 = vmatpush1.msra.mxu0 %v1269
        %1330 = vmatprep.subr.mxu0 0.0
        %1331 = vmatpush1.msra.mxu0 %v1270
        %1332 = vmatprep.subr.mxu0 0.0
        %1333 = vmatpush1.msra.mxu0 %v1271
        %1334 = vmatprep.subr.mxu0 0.0
        %1335 = vmatpush1.msra.mxu0 %v1272
        %1336 = vmatprep.subr.mxu0 0.0
        %1337 = vmatpush1.msra.mxu0 %v1273
        %1338 = vmatprep.subr.mxu0 0.0
        %1339 = vmatpush1.msra.mxu0 %v1274
        %1340 = vmatprep.subr.mxu0 0.0
        %1341 = vmatpush1.msra.mxu0 %v1275
        %1342 = vmatprep.subr.mxu0 0.0
        %1343 = vmatpush1.msra.mxu0 %v1276
        %1344 = vmatprep.subr.mxu0 0.0
        %1345 = vmatpush1.msra.mxu0 %v1277
        %1346 = vmatprep.subr.mxu0 0.0
        %1347 = vmatpush1.msra.mxu0 %v1278
        %1348 = vmatprep.subr.mxu0 0.0
        %1349 = vmatpush1.msra.mxu0 %v1279
        %1350 = vmatprep.subr.mxu0 0.0
        %1351 = vmatpush1.msra.mxu0 %v1280
        %1352 = vmatprep.subr.mxu0 0.0
        %1353 = vmatpush1.msra.mxu0 %v1281
        %1354 = vmatprep.subr.mxu0 0.0
        %1355 = vmatpush1.msra.mxu0 %v1282
        %1356 = vmatprep.subr.mxu0 0.0
        %1357 = vmatpush1.msra.mxu0 %v1283
        %1358 = vmatprep.subr.mxu0 0.0
        %1359 = vmatpush1.msra.mxu0 %v1284
        %1360 = vmatprep.subr.mxu0 0.0
        %1361 = vmatpush1.msra.mxu0 %v1285
        %1362 = vmatprep.subr.mxu0 0.0
        %1363 = vmatpush1.msra.mxu0 %v1286
        %1364 = vmatprep.subr.mxu0 0.0
        %1365 = vmatpush1.msra.mxu0 %v1287
        %1366 = vmatprep.subr.mxu0 0.0
        %1367 = vmatpush1.msra.mxu0 %v1288
        %1368 = vmatprep.subr.mxu0 0.0
        %1369 = vmatpush1.msra.mxu0 %v1289
        %1370 = vmatprep.subr.mxu0 0.0
        %1371 = vmatpush1.msra.mxu0 %v1290
        %1372 = vmatprep.subr.mxu0 0.0
        %1373 = vmatpush1.msra.mxu0 %v1291
        %1374 = vmatprep.subr.mxu0 0.0
        %1375 = vmatpush1.msra.mxu0 %v1292
        %1376 = vmatprep.subr.mxu0 0.0
        %1377 = vmatpush1.msra.mxu0 %v1293
        %1378 = vmatprep.subr.mxu0 0.0
        %1379 = vmatpush1.msra.mxu0 %v1294
        %1380 = vmatprep.subr.mxu0 0.0
        %1381 = vmatpush1.msra.mxu0 %v1295
        %1382 = vmatprep.subr.mxu0 0.0
        %1383 = vmatpush1.msra.mxu0 %v1296
        %1384 = vmatprep.subr.mxu0 0.0
        %1385 = vmatpush1.msra.mxu0 %v1297
        %1386 = vmatprep.mubr.f32.mxu0 %v1299
        %1387 = vmatmul.mubr.f32.gmra.mrb[0].mxu0 %v1298
        %v1388 = vpop.f32.mrb[0].mxu0
        %v1389 = vadd.f32 %v1310, %v1388
        %v1390 = vpop.f32.mrb[0].mxu0
        %1391 = vmatprep.mubr.f32.mxu0 %v1301
        %1392 = vmatmul.mubr.f32.gmra.mrb[0].mxu0 %v1300
        %v1393 = vpop.f32.mrb[0].mxu0
        %v1394 = vadd.f32 %v1315, %v1393
        %v1395 = vpop.f32.mrb[0].mxu0
        %1396 = vmatprep.mubr.f32.mxu0 %v1303
        %1397 = vmatmul.mubr.f32.gmra.mrb[0].mxu0 %v1302
        %v1398 = vpop.f32.mrb[0].mxu0
        %v1399 = vadd.f32 %v1320, %v1398
        %v1400 = vpop.f32.mrb[0].mxu0
        %1401 = vdwg.mxu0
        %1402 = vst [vmem:[%s284] sm:$0xff] %v1389
        %1403 = vst [vmem:[%s284 + $0x8] sm:$0xff] %v1394
        %1404 = vst [vmem:[%s284 + $0x10] sm:$0xff] %v1399
        %s1405 = sand.u32 %s164, 1
        %s1406 = scalar_lea.sflag [#allocation4], %s1405
        %s1407 = sand.u32 %s164, 1
        %s1408 = smul.addr %s1407, 24
        %s1409 = scalar_lea.vmem [#allocation5], %s1408
        // Predicated region
        $region45: #{tpu_custom_call.1} parent=39 // pred_check
          %p1410 = pneg %p174
        $region46: #{tpu_custom_call.1} parent=39 // pred_check_branch
          %1412 = sbr.rel (%p1410) target = $region48
        $region47: #{tpu_custom_call.1} parent=39 // pred_region
          %s1414 = ssub.s32 384, 384
          %1415 = vsyncadd %s1406, %s1414
          %s1416 = smul.addr %s24, 3
          %s1417 = sadd.s32 %s25, %s1416
          %s1418 = smul.addr %s1417, 128
          %s1419 = scalar_lea.hbm %s5, %s1418
          %s1420 = sshll.u32 %s1409, 4
          %s1421 = int_to_ptr.vmem [resolvable:$true] %s1420
          %1426 = dma.vmem_to_hbm [thread:$0]  %s1421, 384, %s1419, %s1406, 128, 128, 8
        $region48: #{tpu_custom_call.1} parent=39 // pred_fallthru
          _
      $region40: #{tpu_custom_call.1} parent=5 // pred_fallthru
        _
      %p1427 = scmp.le.s32.totalorder 2, %s15
      // Predicated region
      $region49: #{tpu_custom_call.1} parent=5 // pred_check
        %p1428 = pneg %p1427
      $region50: #{tpu_custom_call.1} parent=5 // pred_check_branch
        %1430 = sbr.rel (%p1428) target = $region52
      $region51: #{tpu_custom_call.1} parent=5 // pred_region
        %s1431 = ssub.s32 %s15, 2
        // Predicated region
        $region53: #{tpu_custom_call.1} parent=51 // pred_check
          %p1432 = pneg %p180
        $region54: #{tpu_custom_call.1} parent=51 // pred_check_branch
          %1434 = sbr.rel (%p1432) target = $region56
        $region55: #{tpu_custom_call.1} parent=51 // pred_region
          %s1435 = sand.u32 %s165, 1
          %s1436 = scalar_lea.sflag [#allocation4], %s1435
          %s1437 = sand.u32 %s165, 1
          %s1438 = smul.addr %s1437, 24
          %s1439 = scalar_lea.vmem [#allocation5], %s1438
          %1440 = dma.done %s1436, 384
        $region56: #{tpu_custom_call.1} parent=51 // pred_fallthru
          _
      $region52: #{tpu_custom_call.1} parent=5 // pred_fallthru
        _
    $region6: #{tpu_custom_call.1} parent=1 // loop_footer
      %s19 = sadd.s32 1, %s15
    $region7: #{tpu_custom_call.1} parent=1 // loop_footer_branch
      %14 = sbr.rel target = $region3
    $region8: #{tpu_custom_call.1} parent=1 // loop_exit
      _
    %1441 = vsyncpa [#allocation3], 1
    %s1442 = scalar_lea.sflag [#allocation3], 1
    %1443 = vsyncpa %s1442, 1
    %1444 = vsyncpa [#allocation4], 1
    %s1445 = scalar_lea.sflag [#allocation4], 1
    %1446 = vsyncpa %s1445, 1

</llo_original>
